<compile_context>
chip_gen: v7x
topology: tpu7x:2x2x1
jax: 0.10.0
libtpu: 0.0.40
codegen_flags: <defaults>
</compile_context>

<pallas_src>
import math

import jax
import jax.numpy as jnp
from jax import lax
from jax.experimental import pallas as pl
from jax.experimental.pallas import tpu as pltpu

# Small synthetic config (hidden = num_heads * head_dim, as in the module)
S = 32          # total sequence length (sum over cu_seqlens segments)
D = 64          # config.hidden_size
H = 4           # config.num_heads
HD = D // H     # head dim
I = 128         # config.intermediate_size
EPS = 1e-6      # Qwen2RMSNorm eps


# --------------------------- tile-size helpers -------------------------------
def _q_tile(s):
    for t in (256, 128, 64, 32, 16, 8):
        if s % t == 0 and s // t >= 2:      # >=2 parallel steps (v7x: 2 TCs)
            return t
    return s


def _kv_tile(s):
    for t in (512, 256, 128, 64, 32, 16):
        if s % t == 0 and s // t >= 2:
            return t
    return s


def _mlp_row_tile(s):
    # Prefer the largest tile; do not split tiny S into sub-MXU-depth blocks.
    for t in (512, 256):
        if s % t == 0 and s > t:
            return t
    if s <= 512:
        return s
    for t in (128, 64, 32, 16, 8):
        if s % t == 0:
            return t
    return s


# ---------------- Kernel 1: RMSNorm1 + QKV projection + RoPE ------------------
def _qkv_rope_kernel(x_ref, n1w_ref, wqkv_ref, bqkv_ref, cos_ref, sin_ref,
                     q_ref, k_ref, v_ref):
    d = x_ref.shape[1]
    hd = cos_ref.shape[1]
    half = hd // 2
    n_heads = d // hd

    x = x_ref[...].astype(jnp.float32)                        # (TQ, D)

    # RMSNorm 1 (f32 elementwise)
    var = jnp.mean(x * x, axis=-1, keepdims=True)
    xn = x * lax.rsqrt(var + EPS) * n1w_ref[...]

    # QKV projection for all heads in one bf16 MXU matmul, f32 accumulation
    qkv = jnp.dot(xn.astype(jnp.bfloat16), wqkv_ref[...],
                  preferred_element_type=jnp.float32) + bqkv_ref[...]   # (TQ, 3D)

    # Gather heads into batched head-major layout (H, TQ, hd) once per tile.
    q3 = jnp.stack([qkv[:, h * hd:(h + 1) * hd] for h in range(n_heads)], axis=0)
    k3 = jnp.stack([qkv[:, d + h * hd: d + (h + 1) * hd] for h in range(n_heads)], axis=0)
    v3 = jnp.stack([qkv[:, 2 * d + h * hd: 2 * d + (h + 1) * hd]
                    for h in range(n_heads)], axis=0)

    # RoPE: full-width cos and sign-folded sin, single batched rotate-half.
    cosf = cos_ref[...][None]                                  # (1, TQ, hd)
    sinf = sin_ref[...][None]                                  # (1, TQ, hd) = [-sin, sin]

    def rot_half(t):                                           # (H, TQ, hd)
        return jnp.concatenate([t[..., half:], t[..., :half]], axis=-1)

    q_ref[...] = (q3 * cosf + rot_half(q3) * sinf).astype(q_ref.dtype)
    k_ref[...] = (k3 * cosf + rot_half(k3) * sinf).astype(k_ref.dtype)
    v_ref[...] = v3.astype(v_ref.dtype)


def qkv_rope(x, n1w, wqkv_bf, bqkv, cos_full, sin_signed, n_heads):
    s, d = x.shape
    hd = cos_full.shape[1]
    rt = _q_tile(s)
    out_shape = (jax.ShapeDtypeStruct((n_heads, s, hd), jnp.bfloat16),
                 jax.ShapeDtypeStruct((n_heads, s, hd), jnp.bfloat16),
                 jax.ShapeDtypeStruct((n_heads, s, hd), jnp.bfloat16))
    out_spec = pl.BlockSpec((n_heads, rt, hd), lambda i: (0, i, 0))
    return pl.pallas_call(
        _qkv_rope_kernel,
        out_shape=out_shape,
        grid=(s // rt,),
        in_specs=[
            pl.BlockSpec((rt, d), lambda i: (i, 0)),           # hidden row tile
            pl.BlockSpec((1, d), lambda i: (0, 0)),            # norm1 w
            pl.BlockSpec((d, 3 * d), lambda i: (0, 0)),        # qkv w (bf16, resident)
            pl.BlockSpec((1, 3 * d), lambda i: (0, 0)),        # qkv b
            pl.BlockSpec((rt, hd), lambda i: (i, 0)),          # cos (full-width)
            pl.BlockSpec((rt, hd), lambda i: (i, 0)),          # sin (sign-folded)
        ],
        out_specs=(out_spec, out_spec, out_spec),
        compiler_params=pltpu.CompilerParams(dimension_semantics=("parallel",)),
    )(x, n1w, wqkv_bf, bqkv, cos_full, sin_signed)


# ------- Kernel 2: flash varlen attention + out-proj + residual ---------------
def _flash_attn_kernel(cu_ref, x_ref, q_ref, k_ref, v_ref, wp_ref, bp_ref,
                       o_ref, m_sc, l_sc, acc_sc):
    n_heads, tq, hd = q_ref.shape
    tk = k_ref.shape[1]
    qi = pl.program_id(0)
    ki = pl.program_id(1)
    nk = pl.num_programs(1)

    @pl.when(ki == 0)
    def _():
        m_sc[...] = jnp.full(m_sc.shape, -1e30, jnp.float32)
        l_sc[...] = jnp.zeros(l_sc.shape, jnp.float32)
        acc_sc[...] = jnp.zeros(acc_sc.shape, jnp.float32)

    # Scores: bf16 MXU, f32 accumulation, all heads batched (no per-head slices)
    s = jnp.einsum('hqd,hkd->hqk', q_ref[...], k_ref[...],
                   preferred_element_type=jnp.float32) * (1.0 / math.sqrt(hd))

    # Block-diagonal varlen mask from cu_seqlens (SMEM): (TQ,1)/(1,TK) seg ids.
    # NOTE: assumes cu_seqlens[0] == 0 and cu_seqlens[-1] == S (no padding).
    n_seg = cu_ref.shape[0] - 1
    rows = qi * tq + lax.broadcasted_iota(jnp.int32, (tq, 1), 0)
    cols = ki * tk + lax.broadcasted_iota(jnp.int32, (1, tk), 1)
    seg_r = jnp.zeros((tq, 1), jnp.int32)
    seg_c = jnp.zeros((1, tk), jnp.int32)
    for b in range(1, n_seg):                                  # interior boundaries
        boundary = cu_ref[b]
        seg_r = seg_r + (rows >= boundary).astype(jnp.int32)
        seg_c = seg_c + (cols >= boundary).astype(jnp.int32)
    mask = (seg_r == seg_c)[None]                              # (1, TQ, TK)

    # Online softmax update (f32; finite mask sentinel, p explicitly zeroed on
    # masked lanes so fully-masked KV tiles contribute nothing).
    s = jnp.where(mask, s, -1e30)
    m_prev = m_sc[...]
    m_new = jnp.maximum(m_prev, s.max(-1, keepdims=True))
    alpha = jnp.exp(m_prev - m_new)
    p = jnp.exp(s - m_new)
    p = jnp.where(mask, p, 0.0)
    l_sc[...] = alpha * l_sc[...] + p.sum(-1, keepdims=True)
    acc_sc[...] = alpha * acc_sc[...] + jnp.einsum(
        'hqk,hkd->hqd', p.astype(jnp.bfloat16), v_ref[...],
        preferred_element_type=jnp.float32)
    m_sc[...] = m_new

    @pl.when(ki == nk - 1)
    def _():
        # Exact divide for the final normalization (bit-faithful softmax).
        out = x_ref[...].astype(jnp.float32) + bp_ref[...]     # residual + proj bias
        for h in range(n_heads):
            # per-head out-proj accumulation: no head concat, lane-dense output
            oh = (acc_sc[h] * (1.0 / l_sc[h])).astype(jnp.bfloat16)
            out = out + jnp.dot(oh, wp_ref[h], preferred_element_type=jnp.float32)
        o_ref[...] = out.astype(o_ref.dtype)


def flash_attn_proj_residual(x, cu_seqlens, q3, k3, v3, wproj3_bf, bproj):
    s, d = x.shape
    n_heads, _, hd = q3.shape
    tq = _q_tile(s)
    tk = _kv_tile(s)
    grid_spec = pltpu.PrefetchScalarGridSpec(
        num_scalar_prefetch=1,                                 # cu_seqlens -> SMEM
        grid=(s // tq, s // tk),
        in_specs=[
            pl.BlockSpec((tq, d), lambda qi, ki, cu: (qi, 0)),               # residual x
            pl.BlockSpec((n_heads, tq, hd), lambda qi, ki, cu: (0, qi, 0)),  # q
            pl.BlockSpec((n_heads, tk, hd), lambda qi, ki, cu: (0, ki, 0)),  # k
            pl.BlockSpec((n_heads, tk, hd), lambda qi, ki, cu: (0, ki, 0)),  # v
            pl.BlockSpec((n_heads, hd, d), lambda qi, ki, cu: (0, 0, 0)),    # wproj per head
            pl.BlockSpec((1, d), lambda qi, ki, cu: (0, 0)),                 # proj bias
        ],
        out_specs=pl.BlockSpec((tq, d), lambda qi, ki, cu: (qi, 0)),
        scratch_shapes=[
            pltpu.VMEM((n_heads, tq, 1), jnp.float32),          # running max
            pltpu.VMEM((n_heads, tq, 1), jnp.float32),          # running sum
            pltpu.VMEM((n_heads, tq, hd), jnp.float32),         # running acc
        ],
    )
    return pl.pallas_call(
        _flash_attn_kernel,
        out_shape=jax.ShapeDtypeStruct((s, d), x.dtype),
        grid_spec=grid_spec,
        compiler_params=pltpu.CompilerParams(
            dimension_semantics=("parallel", "arbitrary")),
    )(cu_seqlens, x, q3, k3, v3, wproj3_bf, bproj)


# ------------- Kernel 3: RMSNorm2 + SwiGLU MLP + residual ---------------------
def _mlp_kernel(x_ref, n2w_ref, wg_ref, bg_ref, wu_ref, bu_ref,
                wd_ref, bd_ref, o_ref):
    x = x_ref[...].astype(jnp.float32)                         # (TS, D)
    var = jnp.mean(x * x, axis=-1, keepdims=True)
    xn = x * lax.rsqrt(var + EPS) * n2w_ref[...]
    xn_bf = xn.astype(jnp.bfloat16)
    g = jnp.dot(xn_bf, wg_ref[...], preferred_element_type=jnp.float32) + bg_ref[...]
    u = jnp.dot(xn_bf, wu_ref[...], preferred_element_type=jnp.float32) + bu_ref[...]
    hgate = (g * jax.nn.sigmoid(g)) * u                        # f32 VPU/EUP (v5e-safe)
    dn = jnp.dot(hgate.astype(jnp.bfloat16), wd_ref[...],
                 preferred_element_type=jnp.float32) + bd_ref[...]
    o_ref[...] = (x + dn).astype(o_ref.dtype)                  # residual fused


def mlp_block(x, n2w, wg_bf, bg, wu_bf, bu, wd_bf, bd):
    s, d = x.shape
    inter = wg_bf.shape[1]
    ts = _mlp_row_tile(s)
    # TODO(synk): at prod shapes tile the intermediate dim (accumulator on the
    #             down-proj) and set vmem_limit_bytes explicitly.
    return pl.pallas_call(
        _mlp_kernel,
        out_shape=jax.ShapeDtypeStruct((s, d), x.dtype),
        grid=(s // ts,),
        in_specs=[
            pl.BlockSpec((ts, d), lambda i: (i, 0)),           # activation row tiles
            pl.BlockSpec((1, d), lambda i: (0, 0)),            # norm2 w
            pl.BlockSpec((d, inter), lambda i: (0, 0)),        # gate w (bf16, resident)
            pl.BlockSpec((1, inter), lambda i: (0, 0)),        # gate b
            pl.BlockSpec((d, inter), lambda i: (0, 0)),        # up w
            pl.BlockSpec((1, inter), lambda i: (0, 0)),        # up b
            pl.BlockSpec((inter, d), lambda i: (0, 0)),        # down w
            pl.BlockSpec((1, d), lambda i: (0, 0)),            # down b
        ],
        out_specs=pl.BlockSpec((ts, d), lambda i: (i, 0)),
        compiler_params=pltpu.CompilerParams(dimension_semantics=("parallel",)),
    )(x, n2w.reshape(1, d), wg_bf, bg.reshape(1, inter), wu_bf, bu.reshape(1, inter),
      wd_bf, bd.reshape(1, d))


# ------------------------------- Block forward --------------------------------
def vision_block_forward(hidden_states, cu_seqlens, rotary_pos_emb, p):
    s, d = hidden_states.shape
    half = rotary_pos_emb.shape[1]
    hd = 2 * half
    n_heads = d // hd

    cos = jnp.cos(rotary_pos_emb).astype(jnp.float32)          # (S, hd/2)
    sin = jnp.sin(rotary_pos_emb).astype(jnp.float32)
    cos_full = jnp.concatenate([cos, cos], axis=-1)            # (S, hd), lane-dense
    sin_signed = jnp.concatenate([-sin, sin], axis=-1)         # rotate-half sign folded

    bf = jnp.bfloat16
    wqkv_bf = p["qkv_w"].astype(bf)
    wproj3_bf = p["proj_w"].reshape(n_heads, hd, d).astype(bf)  # pre-split per head
    wg_bf = p["gate_w"].astype(bf)
    wu_bf = p["up_w"].astype(bf)
    wd_bf = p["down_w"].astype(bf)

    # 1) RMSNorm1 + QKV + RoPE (row-tiled, parallel) -> head-major bf16 q/k/v
    q3, k3, v3 = qkv_rope(hidden_states, p["norm1_w"].reshape(1, d), wqkv_bf,
                          p["qkv_b"].reshape(1, 3 * d), cos_full, sin_signed,
                          n_heads)

    # 2) flash varlen attention + out-proj + residual
    h1 = flash_attn_proj_residual(hidden_states, cu_seqlens, q3, k3, v3,
                                  wproj3_bf, p["proj_b"].reshape(1, d))

    # 3) RMSNorm2 + SwiGLU MLP + residual
    out = mlp_block(h1, p["norm2_w"], wg_bf, p["gate_b"], wu_bf, p["up_b"],
                    wd_bf, p["down_b"])
    return out


# ----------------------- Pure-JAX reference (matched precision) ----------------
def ref_forward(x, cu_seqlens, rope_freqs, p):
    s_len, d = x.shape
    half = rope_freqs.shape[1]
    hd = 2 * half
    n_heads = d // hd
    bfc = lambda a: a.astype(jnp.bfloat16)

    def rms(z, w):
        var = jnp.mean(z * z, -1, keepdims=True)
        return z * lax.rsqrt(var + EPS) * w

    xn = rms(x, p["norm1_w"])
    qkv = jnp.dot(bfc(xn), bfc(p["qkv_w"]),
                  preferred_element_type=jnp.float32) + p["qkv_b"]
    qkv = qkv.reshape(s_len, 3, n_heads, hd).transpose(1, 2, 0, 3)   # (3, H, S, hd)
    q, k, v = qkv[0], qkv[1], qkv[2]
    cos = jnp.cos(rope_freqs)[None]
    sin = jnp.sin(rope_freqs)[None]

    def rope(z):
        z1, z2 = z[..., :half], z[..., half:]
        return jnp.concatenate([z1 * cos - z2 * sin, z2 * cos + z1 * sin], -1)

    q, k, v = bfc(rope(q)), bfc(rope(k)), bfc(v)
    seg = jnp.searchsorted(cu_seqlens[1:],
                           jnp.arange(s_len, dtype=cu_seqlens.dtype), side="right")
    sc = jnp.einsum("hqd,hkd->hqk", q, k,
                    preferred_element_type=jnp.float32) / math.sqrt(hd)
    mask = (seg[:, None] == seg[None, :])[None]
    sc = jnp.where(mask, sc, -1e30)
    m = sc.max(-1, keepdims=True)
    pexp = jnp.exp(sc - m)
    l = pexp.sum(-1, keepdims=True)
    attn = jnp.einsum("hqk,hkd->hqd", bfc(pexp), v,
                      preferred_element_type=jnp.float32) / l
    attn = attn.transpose(1, 0, 2).reshape(s_len, d)
    x = x + (jnp.dot(bfc(attn), bfc(p["proj_w"]),
                     preferred_element_type=jnp.float32) + p["proj_b"])
    h2 = rms(x, p["norm2_w"])
    g = jnp.dot(bfc(h2), bfc(p["gate_w"]),
                preferred_element_type=jnp.float32) + p["gate_b"]
    u = jnp.dot(bfc(h2), bfc(p["up_w"]),
                preferred_element_type=jnp.float32) + p["up_b"]
    hh = (g * jax.nn.sigmoid(g)) * u
    x = x + (jnp.dot(bfc(hh), bfc(p["down_w"]),
                     preferred_element_type=jnp.float32) + p["down_b"])
    return x


# ---------------------------------- main --------------------------------------
if __name__ == "__main__":
    key = jax.random.PRNGKey(0)
    ks = jax.random.split(key, 16)

    def nrm(k, shape, scale=0.05):
        return (scale * jax.random.normal(k, shape)).astype(jnp.float32)

    params = {
        "norm1_w": jnp.ones((D,), jnp.float32) + nrm(ks[0], (D,), 0.02),
        "norm2_w": jnp.ones((D,), jnp.float32) + nrm(ks[1], (D,), 0.02),
        "qkv_w": nrm(ks[2], (D, 3 * D)),
        "qkv_b": nrm(ks[3], (3 * D,)),
        "proj_w": nrm(ks[4], (D, D)),
        "proj_b": nrm(ks[5], (D,)),
        "gate_w": nrm(ks[6], (D, I)),
        "gate_b": nrm(ks[7], (I,)),
        "up_w": nrm(ks[8], (D, I)),
        "up_b": nrm(ks[9], (I,)),
        "down_w": nrm(ks[10], (I, D)),
        "down_b": nrm(ks[11], (D,)),
    }

    hidden_states = jax.random.normal(ks[12], (S, D), dtype=jnp.float32)
    cu_seqlens = jnp.array([0, 16, 32], dtype=jnp.int32)   # two varlen segments

    # rotary_pos_emb as produced by the vision tower: (S, head_dim // 2) angles
    pos = jnp.arange(S, dtype=jnp.float32)
    inv_freq = 1.0 / (10000.0 ** (jnp.arange(HD // 2, dtype=jnp.float32) / (HD // 2)))
    rotary_pos_emb = jnp.outer(pos, inv_freq).astype(jnp.float32)

    out = vision_block_forward(hidden_states, cu_seqlens, rotary_pos_emb, params)
    out = jax.block_until_ready(out)

    ref = ref_forward(hidden_states, cu_seqlens, rotary_pos_emb, params)
    assert out.shape == (S, D)
    # Tolerance accounts for bf16 MXU operands (incl. softmax probabilities
    # rounded relative to the per-KV-tile running max in the online softmax).
    assert jnp.allclose(out, ref, rtol=1e-2, atol=1e-2), "mismatch vs JAX reference"

    print("KERNEL_OK")
</pallas_src>

<mosaic_0001>
module attributes {stable_mosaic.version = 11 : i64} {
  func.func @_qkv_rope_kernel(%arg0: i32, %arg1: memref<16x64xf32, #tpu.memory_space<vmem>>, %arg2: memref<1x64xf32, #tpu.memory_space<vmem>>, %arg3: memref<64x192xbf16, #tpu.memory_space<vmem>>, %arg4: memref<1x192xf32, #tpu.memory_space<vmem>>, %arg5: memref<16x16xf32, #tpu.memory_space<vmem>>, %arg6: memref<16x16xf32, #tpu.memory_space<vmem>>, %arg7: memref<4x16x16xbf16, #tpu.memory_space<vmem>>, %arg8: memref<4x16x16xbf16, #tpu.memory_space<vmem>>, %arg9: memref<4x16x16xbf16, #tpu.memory_space<vmem>>) attributes {dimension_semantics = [#tpu.dimension_semantics<parallel>], iteration_bounds = array<i64: 2>, scalar_prefetch = 0 : i64, scratch_operands = 0 : i64, tpu.core_type = #tpu.core_type<tc>, window_params = [{transform_indices = @transform_0, window_bounds = array<i64: 16, 64>}, {pipeline_mode = #tpu.pipeline_mode<synchronous>, transform_indices = @transform_1, window_bounds = array<i64: 1, 64>}, {pipeline_mode = #tpu.pipeline_mode<synchronous>, transform_indices = @transform_2, window_bounds = array<i64: 64, 192>}, {pipeline_mode = #tpu.pipeline_mode<synchronous>, transform_indices = @transform_3, window_bounds = array<i64: 1, 192>}, {transform_indices = @transform_4, window_bounds = array<i64: 16, 16>}, {transform_indices = @transform_5, window_bounds = array<i64: 16, 16>}, {transform_indices = @transform_6, window_bounds = array<i64: 4, 16, 16>}, {transform_indices = @transform_7, window_bounds = array<i64: 4, 16, 16>}, {transform_indices = @transform_8, window_bounds = array<i64: 4, 16, 16>}]} {
    %c0 = arith.constant 0 : index
    %c0_0 = arith.constant 0 : index
    %0 = vector.load %arg1[%c0, %c0_0] : memref<16x64xf32, #tpu.memory_space<vmem>>, vector<16x64xf32>
    %1 = arith.mulf %0, %0 : vector<16x64xf32>
    %cst = arith.constant dense<0.000000e+00> : vector<16xf32>
    %2 = vector.multi_reduction <add>, %1, %cst [1] : vector<16x64xf32> to vector<16xf32>
    %3 = vector.shape_cast %2 : vector<16xf32> to vector<16x1xf32>
    %cst_1 = arith.constant 6.400000e+01 : f32
    %4 = vector.broadcast %cst_1 : f32 to vector<16x1xf32>
    %5 = arith.divf %3, %4 : vector<16x1xf32>
    %cst_2 = arith.constant 9.99999997E-7 : f32
    %6 = vector.broadcast %cst_2 : f32 to vector<16x1xf32>
    %7 = arith.addf %5, %6 : vector<16x1xf32>
    %8 = math.rsqrt %7 : vector<16x1xf32>
    %9 = vector.broadcast %8 : vector<16x1xf32> to vector<16x64xf32>
    %10 = arith.mulf %0, %9 : vector<16x64xf32>
    %c0_3 = arith.constant 0 : index
    %c0_4 = arith.constant 0 : index
    %11 = vector.load %arg2[%c0_3, %c0_4] : memref<1x64xf32, #tpu.memory_space<vmem>>, vector<1x64xf32>
    %12 = vector.broadcast %11 : vector<1x64xf32> to vector<16x64xf32>
    %13 = arith.mulf %10, %12 : vector<16x64xf32>
    %14 = arith.truncf %13 : vector<16x64xf32> to vector<16x64xbf16>
    %c0_5 = arith.constant 0 : index
    %c0_6 = arith.constant 0 : index
    %15 = vector.load %arg3[%c0_5, %c0_6] : memref<64x192xbf16, #tpu.memory_space<vmem>>, vector<64x192xbf16>
    %cst_7 = arith.constant dense<0.000000e+00> : vector<16x192xf32>
    %16 = tpu.matmul %14, %15, %cst_7 {dimension_numbers = #tpu.dot_dimension_numbers<[1], [0], [0], [1], [0, 0, 1, 1], [], []>} : vector<16x64xbf16>, vector<64x192xbf16>, vector<16x192xf32> -> vector<16x192xf32>
    %c0_8 = arith.constant 0 : index
    %c0_9 = arith.constant 0 : index
    %17 = vector.load %arg4[%c0_8, %c0_9] : memref<1x192xf32, #tpu.memory_space<vmem>>, vector<1x192xf32>
    %18 = vector.broadcast %17 : vector<1x192xf32> to vector<16x192xf32>
    %19 = arith.addf %16, %18 : vector<16x192xf32>
    %20 = vector.extract_strided_slice %19 {offsets = [0, 0], sizes = [16, 16], strides = [1, 1]} : vector<16x192xf32> to vector<16x16xf32>
    %21 = vector.extract_strided_slice %19 {offsets = [0, 16], sizes = [16, 16], strides = [1, 1]} : vector<16x192xf32> to vector<16x16xf32>
    %22 = vector.extract_strided_slice %19 {offsets = [0, 32], sizes = [16, 16], strides = [1, 1]} : vector<16x192xf32> to vector<16x16xf32>
    %23 = vector.extract_strided_slice %19 {offsets = [0, 48], sizes = [16, 16], strides = [1, 1]} : vector<16x192xf32> to vector<16x16xf32>
    %24 = vector.shape_cast %20 : vector<16x16xf32> to vector<1x16x16xf32>
    %25 = vector.shape_cast %21 : vector<16x16xf32> to vector<1x16x16xf32>
    %26 = vector.shape_cast %22 : vector<16x16xf32> to vector<1x16x16xf32>
    %27 = vector.shape_cast %23 : vector<16x16xf32> to vector<1x16x16xf32>
    %28 = tpu.concatenate %24, %25, %26, %27 in 0 : vector<1x16x16xf32>, vector<1x16x16xf32>, vector<1x16x16xf32>, vector<1x16x16xf32> -> vector<4x16x16xf32>
    %29 = vector.extract_strided_slice %19 {offsets = [0, 64], sizes = [16, 16], strides = [1, 1]} : vector<16x192xf32> to vector<16x16xf32>
    %30 = vector.extract_strided_slice %19 {offsets = [0, 80], sizes = [16, 16], strides = [1, 1]} : vector<16x192xf32> to vector<16x16xf32>
    %31 = vector.extract_strided_slice %19 {offsets = [0, 96], sizes = [16, 16], strides = [1, 1]} : vector<16x192xf32> to vector<16x16xf32>
    %32 = vector.extract_strided_slice %19 {offsets = [0, 112], sizes = [16, 16], strides = [1, 1]} : vector<16x192xf32> to vector<16x16xf32>
    %33 = vector.shape_cast %29 : vector<16x16xf32> to vector<1x16x16xf32>
    %34 = vector.shape_cast %30 : vector<16x16xf32> to vector<1x16x16xf32>
    %35 = vector.shape_cast %31 : vector<16x16xf32> to vector<1x16x16xf32>
    %36 = vector.shape_cast %32 : vector<16x16xf32> to vector<1x16x16xf32>
    %37 = tpu.concatenate %33, %34, %35, %36 in 0 : vector<1x16x16xf32>, vector<1x16x16xf32>, vector<1x16x16xf32>, vector<1x16x16xf32> -> vector<4x16x16xf32>
    %38 = vector.extract_strided_slice %19 {offsets = [0, 128], sizes = [16, 16], strides = [1, 1]} : vector<16x192xf32> to vector<16x16xf32>
    %39 = vector.extract_strided_slice %19 {offsets = [0, 144], sizes = [16, 16], strides = [1, 1]} : vector<16x192xf32> to vector<16x16xf32>
    %40 = vector.extract_strided_slice %19 {offsets = [0, 160], sizes = [16, 16], strides = [1, 1]} : vector<16x192xf32> to vector<16x16xf32>
    %41 = vector.extract_strided_slice %19 {offsets = [0, 176], sizes = [16, 16], strides = [1, 1]} : vector<16x192xf32> to vector<16x16xf32>
    %42 = vector.shape_cast %38 : vector<16x16xf32> to vector<1x16x16xf32>
    %43 = vector.shape_cast %39 : vector<16x16xf32> to vector<1x16x16xf32>
    %44 = vector.shape_cast %40 : vector<16x16xf32> to vector<1x16x16xf32>
    %45 = vector.shape_cast %41 : vector<16x16xf32> to vector<1x16x16xf32>
    %46 = tpu.concatenate %42, %43, %44, %45 in 0 : vector<1x16x16xf32>, vector<1x16x16xf32>, vector<1x16x16xf32>, vector<1x16x16xf32> -> vector<4x16x16xf32>
    %c0_10 = arith.constant 0 : index
    %c0_11 = arith.constant 0 : index
    %47 = vector.load %arg5[%c0_10, %c0_11] : memref<16x16xf32, #tpu.memory_space<vmem>>, vector<16x16xf32>
    %48 = vector.shape_cast %47 : vector<16x16xf32> to vector<1x16x16xf32>
    %c0_12 = arith.constant 0 : index
    %c0_13 = arith.constant 0 : index
    %49 = vector.load %arg6[%c0_12, %c0_13] : memref<16x16xf32, #tpu.memory_space<vmem>>, vector<16x16xf32>
    %50 = vector.shape_cast %49 : vector<16x16xf32> to vector<1x16x16xf32>
    %51 = vector.broadcast %48 : vector<1x16x16xf32> to vector<4x16x16xf32>
    %52 = arith.mulf %28, %51 : vector<4x16x16xf32>
    %53 = vector.extract_strided_slice %28 {offsets = [0, 0, 8], sizes = [4, 16, 8], strides = [1, 1, 1]} : vector<4x16x16xf32> to vector<4x16x8xf32>
    %54 = vector.extract_strided_slice %28 {offsets = [0, 0, 0], sizes = [4, 16, 8], strides = [1, 1, 1]} : vector<4x16x16xf32> to vector<4x16x8xf32>
    %55 = tpu.concatenate %53, %54 in 2 : vector<4x16x8xf32>, vector<4x16x8xf32> -> vector<4x16x16xf32>
    %56 = vector.broadcast %50 : vector<1x16x16xf32> to vector<4x16x16xf32>
    %57 = arith.mulf %55, %56 : vector<4x16x16xf32>
    %58 = arith.addf %52, %57 : vector<4x16x16xf32>
    %59 = arith.truncf %58 : vector<4x16x16xf32> to vector<4x16x16xbf16>
    %c0_14 = arith.constant 0 : index
    %c0_15 = arith.constant 0 : index
    %c0_16 = arith.constant 0 : index
    %60 = vector.load %arg7[%c0_14, %c0_15, %c0_16] : memref<4x16x16xbf16, #tpu.memory_space<vmem>>, vector<4x16x16xbf16>
    tpu.vector_store %arg7[%c0_14, %c0_15, %c0_16], %59 {strides = array<i32>} : memref<4x16x16xbf16, #tpu.memory_space<vmem>>, vector<4x16x16xbf16>,
    %61 = vector.broadcast %48 : vector<1x16x16xf32> to vector<4x16x16xf32>
    %62 = arith.mulf %37, %61 : vector<4x16x16xf32>
    %63 = vector.extract_strided_slice %37 {offsets = [0, 0, 8], sizes = [4, 16, 8], strides = [1, 1, 1]} : vector<4x16x16xf32> to vector<4x16x8xf32>
    %64 = vector.extract_strided_slice %37 {offsets = [0, 0, 0], sizes = [4, 16, 8], strides = [1, 1, 1]} : vector<4x16x16xf32> to vector<4x16x8xf32>
    %65 = tpu.concatenate %63, %64 in 2 : vector<4x16x8xf32>, vector<4x16x8xf32> -> vector<4x16x16xf32>
    %66 = vector.broadcast %50 : vector<1x16x16xf32> to vector<4x16x16xf32>
    %67 = arith.mulf %65, %66 : vector<4x16x16xf32>
    %68 = arith.addf %62, %67 : vector<4x16x16xf32>
    %69 = arith.truncf %68 : vector<4x16x16xf32> to vector<4x16x16xbf16>
    %c0_17 = arith.constant 0 : index
    %c0_18 = arith.constant 0 : index
    %c0_19 = arith.constant 0 : index
    %70 = vector.load %arg8[%c0_17, %c0_18, %c0_19] : memref<4x16x16xbf16, #tpu.memory_space<vmem>>, vector<4x16x16xbf16>
    tpu.vector_store %arg8[%c0_17, %c0_18, %c0_19], %69 {strides = array<i32>} : memref<4x16x16xbf16, #tpu.memory_space<vmem>>, vector<4x16x16xbf16>,
    %71 = arith.truncf %46 : vector<4x16x16xf32> to vector<4x16x16xbf16>
    %c0_20 = arith.constant 0 : index
    %c0_21 = arith.constant 0 : index
    %c0_22 = arith.constant 0 : index
    %72 = vector.load %arg9[%c0_20, %c0_21, %c0_22] : memref<4x16x16xbf16, #tpu.memory_space<vmem>>, vector<4x16x16xbf16>
    tpu.vector_store %arg9[%c0_20, %c0_21, %c0_22], %71 {strides = array<i32>} : memref<4x16x16xbf16, #tpu.memory_space<vmem>>, vector<4x16x16xbf16>,
    return
  }
  func.func @transform_0(%arg0: i32) -> (i32, i32) {
    %c0_i32 = arith.constant 0 : i32
    %c0_i32_0 = arith.constant 0 : i32
    return %arg0, %c0_i32 : i32, i32
  }
  func.func @transform_1(%arg0: i32) -> (i32, i32) {
    %c0_i32 = arith.constant 0 : i32
    %c0_i32_0 = arith.constant 0 : i32
    %c0_i32_1 = arith.constant 0 : i32
    return %c0_i32, %c0_i32_0 : i32, i32
  }
  func.func @transform_2(%arg0: i32) -> (i32, i32) {
    %c0_i32 = arith.constant 0 : i32
    %c0_i32_0 = arith.constant 0 : i32
    %c0_i32_1 = arith.constant 0 : i32
    return %c0_i32, %c0_i32_0 : i32, i32
  }
  func.func @transform_3(%arg0: i32) -> (i32, i32) {
    %c0_i32 = arith.constant 0 : i32
    %c0_i32_0 = arith.constant 0 : i32
    %c0_i32_1 = arith.constant 0 : i32
    return %c0_i32, %c0_i32_0 : i32, i32
  }
  func.func @transform_4(%arg0: i32) -> (i32, i32) {
    %c0_i32 = arith.constant 0 : i32
    %c0_i32_0 = arith.constant 0 : i32
    return %arg0, %c0_i32 : i32, i32
  }
  func.func @transform_5(%arg0: i32) -> (i32, i32) {
    %c0_i32 = arith.constant 0 : i32
    %c0_i32_0 = arith.constant 0 : i32
    return %arg0, %c0_i32 : i32, i32
  }
  func.func @transform_6(%arg0: i32) -> (i32, i32, i32) {
    %c0_i32 = arith.constant 0 : i32
    %c0_i32_0 = arith.constant 0 : i32
    %c0_i32_1 = arith.constant 0 : i32
    return %c0_i32, %arg0, %c0_i32_0 : i32, i32, i32
  }
  func.func @transform_7(%arg0: i32) -> (i32, i32, i32) {
    %c0_i32 = arith.constant 0 : i32
    %c0_i32_0 = arith.constant 0 : i32
    %c0_i32_1 = arith.constant 0 : i32
    return %c0_i32, %arg0, %c0_i32_0 : i32, i32, i32
  }
  func.func @transform_8(%arg0: i32) -> (i32, i32, i32) {
    %c0_i32 = arith.constant 0 : i32
    %c0_i32_0 = arith.constant 0 : i32
    %c0_i32_1 = arith.constant 0 : i32
    return %c0_i32, %arg0, %c0_i32_0 : i32, i32, i32
  }
}

</mosaic_0001>

<llo_original>
// kernel: tpu_custom_call.1
$region0: #{tpu_custom_call.1}
  #allocation0 [shape = 'u32[]', space=smem, size = 0x4, offset = 0x4, fixed_abs, tag = 'smem constant byte address 0x4 - core index']
  #allocation1 [shape = 'u32[144,128]{1,0:T(1,128)}', space=vmem, size = 0x12000, scoped, tag = 'internal scratch']
  %s0 = inlined_call_operand.vmem [shape: f32[32,64], index: 0, kind: input, shape index: {}]
  %s1 = inlined_call_operand.hbm [shape: f32[1,64], index: 1, kind: input, shape index: {}]
  %s2 = inlined_call_operand.vmem [shape: bf16[64,192], index: 2, kind: input, shape index: {}]
  %s3 = inlined_call_operand.vmem [shape: f32[1,192], index: 3, kind: input, shape index: {}]
  %s4 = inlined_call_operand.vmem [shape: f32[32,16], index: 4, kind: input, shape index: {}]
  %s5 = inlined_call_operand.vmem [shape: f32[32,16], index: 5, kind: input, shape index: {}]
  %s6 = inlined_call_operand.vmem [shape: bf16[4,32,16], index: 6, kind: output, shape index: {0}]
  %s7 = inlined_call_operand.vmem [shape: bf16[4,32,16], index: 7, kind: output, shape index: {1}]
  %s8 = inlined_call_operand.vmem [shape: bf16[4,32,16], index: 8, kind: output, shape index: {2}]
  %9 = xla_tuple %s6, %s7, %s8
  %s10 = sld [smem:[#allocation0]]
  $region188: #{tpu_custom_call.1} parent=0
    _
  %s12 = ssub.s32 1, %s10
  %s13 = scalar_select 0, %s12, %s10
  $region1: #{tpu_custom_call.1} parent=0
    #allocation2 [shape = 'u8[512]{0}', space=vmem, size = 0x400, scoped, tag = 'input window, operand 1, single buffered']
    #allocation3 [shape = 's32[2]{0}', space=sflag, size = 0x8, scoped, tag = 'scoped memory for tpu_custom_call.1']
    #allocation4 [shape = 'u8[32768]{0}', space=vmem, size = 0x8000, scoped, tag = 'output window, operand 0']
    #allocation5 [shape = 'u8[32768]{0}', space=vmem, size = 0x8000, scoped, tag = 'output window, operand 1']
    #allocation6 [shape = 'u8[32768]{0}', space=vmem, size = 0x8000, scoped, tag = 'output window, operand 2']
    %14 = vsyncpa [#allocation3], 0
    loop: start=0, step=1, limit=4
    $region2: #{tpu_custom_call.1} parent=1 // loop_pre_header
      _
    $region3: #{tpu_custom_call.1} parent=1 // loop_header
      %s16 = sphi 0, %s20
      %p17 = scmp.ge.s32.totalorder %s16, 4
      %s26 = sphi 0, %s28
      %s29 = sphi 0, %s26
      %s30 = sphi 0, %s29
      %s46 = sphi 0, %s30
      %s50 = sphi 0, %s50
      %s52 = sphi 0, %s50
      %s53 = sphi 0, %s52
      %s67 = sphi 0, %s53
      %s71 = sphi 0, %s71
      %s73 = sphi 0, %s71
      %s74 = sphi 0, %s73
      %s88 = sphi 0, %s74
      %s92 = sphi 0, %s92
      %s94 = sphi 0, %s92
      %s95 = sphi 0, %s94
      %s109 = sphi 0, %s95
      %s115 = sphi 0, %s117
      %s118 = sphi 0, %s115
      %s119 = sphi 0, %s118
      %s135 = sphi 0, %s119
      %s141 = sphi 0, %s143
      %s144 = sphi 0, %s141
      %s145 = sphi 0, %s144
      %s161 = sphi 0, %s145
      %s167 = sphi 0, %s169
      %s170 = sphi 0, %s167
      %s171 = sphi 0, %s170
      %s187 = sphi 0, %s171
      %s193 = sphi 0, %s195
      %s196 = sphi 0, %s193
      %s197 = sphi 0, %s196
      %s213 = sphi 0, %s197
      %s219 = sphi 0, %s221
      %s222 = sphi 0, %s219
      %s223 = sphi 0, %s222
      %s239 = sphi 0, %s223
    $region4: #{tpu_custom_call.1} parent=1 // loop_header_branch
      %19 = sbr.rel (%p17) target = $region8
    $region5: #{tpu_custom_call.1} parent=1 // loop_body
      %s21 = ssub.s32 %s16, 1
      %s22 = ssub.s32 %s16, 2
      %s23 = sadd.s32 %s16, 1
      %s24 = ssub.s32 %s16, %s23
      %p25 = scmp.eq.s32.totalorder %s24, 0
      %s27 = sadd.s32 %s26, 1
      %s28 = scalar_select %p25, %s26, %s27
      %p31 = pneg %p25
      %p32 = scmp.eq.s32.totalorder %s16, 1
      %p33 = por %p31, %p32
      %p34 = scmp.ne.s32.totalorder %s26, %s29
      %p35 = scmp.eq.s32.totalorder %s16, 0
      %p36 = por %p34, %p35
      %p37 = scmp.ne.s32.totalorder %s26, %s29
      %p38 = scmp.eq.s32.totalorder %s21, 1
      %p39 = por %p37, %p38
      %p40 = scmp.ne.s32.totalorder %s29, %s30
      %p41 = scmp.eq.s32.totalorder %s21, 0
      %p42 = por %p40, %p41
      %p43 = scmp.ne.s32.totalorder %s29, %s30
      %p44 = scmp.eq.s32.totalorder %s22, 1
      %p45 = por %p43, %p44
      %p47 = scmp.ne.s32.totalorder %s30, %s46
      %p48 = scmp.eq.s32.totalorder %s22, 0
      %p49 = por %p47, %p48
      %s51 = sadd.s32 %s50, 1
      %p54 = scmp.eq.s32.totalorder %s16, 1
      %p55 = scmp.ne.s32.totalorder %s50, %s52
      %p56 = scmp.eq.s32.totalorder %s16, 0
      %p57 = por %p55, %p56
      %p58 = scmp.ne.s32.totalorder %s50, %s52
      %p59 = scmp.eq.s32.totalorder %s21, 1
      %p60 = por %p58, %p59
      %p61 = scmp.ne.s32.totalorder %s52, %s53
      %p62 = scmp.eq.s32.totalorder %s21, 0
      %p63 = por %p61, %p62
      %p64 = scmp.ne.s32.totalorder %s52, %s53
      %p65 = scmp.eq.s32.totalorder %s22, 1
      %p66 = por %p64, %p65
      %p68 = scmp.ne.s32.totalorder %s53, %s67
      %p69 = scmp.eq.s32.totalorder %s22, 0
      %p70 = por %p68, %p69
      %s72 = sadd.s32 %s71, 1
      %p75 = scmp.eq.s32.totalorder %s16, 1
      %p76 = scmp.ne.s32.totalorder %s71, %s73
      %p77 = scmp.eq.s32.totalorder %s16, 0
      %p78 = por %p76, %p77
      %p79 = scmp.ne.s32.totalorder %s71, %s73
      %p80 = scmp.eq.s32.totalorder %s21, 1
      %p81 = por %p79, %p80
      %p82 = scmp.ne.s32.totalorder %s73, %s74
      %p83 = scmp.eq.s32.totalorder %s21, 0
      %p84 = por %p82, %p83
      %p85 = scmp.ne.s32.totalorder %s73, %s74
      %p86 = scmp.eq.s32.totalorder %s22, 1
      %p87 = por %p85, %p86
      %p89 = scmp.ne.s32.totalorder %s74, %s88
      %p90 = scmp.eq.s32.totalorder %s22, 0
      %p91 = por %p89, %p90
      %s93 = sadd.s32 %s92, 1
      %p96 = scmp.eq.s32.totalorder %s16, 1
      %p97 = scmp.ne.s32.totalorder %s92, %s94
      %p98 = scmp.eq.s32.totalorder %s16, 0
      %p99 = por %p97, %p98
      %p100 = scmp.ne.s32.totalorder %s92, %s94
      %p101 = scmp.eq.s32.totalorder %s21, 1
      %p102 = por %p100, %p101
      %p103 = scmp.ne.s32.totalorder %s94, %s95
      %p104 = scmp.eq.s32.totalorder %s21, 0
      %p105 = por %p103, %p104
      %p106 = scmp.ne.s32.totalorder %s94, %s95
      %p107 = scmp.eq.s32.totalorder %s22, 1
      %p108 = por %p106, %p107
      %p110 = scmp.ne.s32.totalorder %s95, %s109
      %p111 = scmp.eq.s32.totalorder %s22, 0
      %p112 = por %p110, %p111
      %s113 = ssub.s32 %s16, %s23
      %p114 = scmp.eq.s32.totalorder %s113, 0
      %s116 = sadd.s32 %s115, 1
      %s117 = scalar_select %p114, %s115, %s116
      %p120 = pneg %p114
      %p121 = scmp.eq.s32.totalorder %s16, 1
      %p122 = por %p120, %p121
      %p123 = scmp.ne.s32.totalorder %s115, %s118
      %p124 = scmp.eq.s32.totalorder %s16, 0
      %p125 = por %p123, %p124
      %p126 = scmp.ne.s32.totalorder %s115, %s118
      %p127 = scmp.eq.s32.totalorder %s21, 1
      %p128 = por %p126, %p127
      %p129 = scmp.ne.s32.totalorder %s118, %s119
      %p130 = scmp.eq.s32.totalorder %s21, 0
      %p131 = por %p129, %p130
      %p132 = scmp.ne.s32.totalorder %s118, %s119
      %p133 = scmp.eq.s32.totalorder %s22, 1
      %p134 = por %p132, %p133
      %p136 = scmp.ne.s32.totalorder %s119, %s135
      %p137 = scmp.eq.s32.totalorder %s22, 0
      %p138 = por %p136, %p137
      %s139 = ssub.s32 %s16, %s23
      %p140 = scmp.eq.s32.totalorder %s139, 0
      %s142 = sadd.s32 %s141, 1
      %s143 = scalar_select %p140, %s141, %s142
      %p146 = pneg %p140
      %p147 = scmp.eq.s32.totalorder %s16, 1
      %p148 = por %p146, %p147
      %p149 = scmp.ne.s32.totalorder %s141, %s144
      %p150 = scmp.eq.s32.totalorder %s16, 0
      %p151 = por %p149, %p150
      %p152 = scmp.ne.s32.totalorder %s141, %s144
      %p153 = scmp.eq.s32.totalorder %s21, 1
      %p154 = por %p152, %p153
      %p155 = scmp.ne.s32.totalorder %s144, %s145
      %p156 = scmp.eq.s32.totalorder %s21, 0
      %p157 = por %p155, %p156
      %p158 = scmp.ne.s32.totalorder %s144, %s145
      %p159 = scmp.eq.s32.totalorder %s22, 1
      %p160 = por %p158, %p159
      %p162 = scmp.ne.s32.totalorder %s145, %s161
      %p163 = scmp.eq.s32.totalorder %s22, 0
      %p164 = por %p162, %p163
      %s165 = ssub.s32 %s16, %s23
      %p166 = scmp.eq.s32.totalorder %s165, 0
      %s168 = sadd.s32 %s167, 1
      %s169 = scalar_select %p166, %s167, %s168
      %p172 = pneg %p166
      %p173 = scmp.eq.s32.totalorder %s16, 1
      %p174 = por %p172, %p173
      %p175 = scmp.ne.s32.totalorder %s167, %s170
      %p176 = scmp.eq.s32.totalorder %s16, 0
      %p177 = por %p175, %p176
      %p178 = scmp.ne.s32.totalorder %s167, %s170
      %p179 = scmp.eq.s32.totalorder %s21, 1
      %p180 = por %p178, %p179
      %p181 = scmp.ne.s32.totalorder %s170, %s171
      %p182 = scmp.eq.s32.totalorder %s21, 0
      %p183 = por %p181, %p182
      %p184 = scmp.ne.s32.totalorder %s170, %s171
      %p185 = scmp.eq.s32.totalorder %s22, 1
      %p186 = por %p184, %p185
      %p188 = scmp.ne.s32.totalorder %s171, %s187
      %p189 = scmp.eq.s32.totalorder %s22, 0
      %p190 = por %p188, %p189
      %s191 = ssub.s32 %s16, %s23
      %p192 = scmp.eq.s32.totalorder %s191, 0
      %s194 = sadd.s32 %s193, 1
      %s195 = scalar_select %p192, %s193, %s194
      %p198 = pneg %p192
      %p199 = scmp.eq.s32.totalorder %s16, 1
      %p200 = por %p198, %p199
      %p201 = scmp.ne.s32.totalorder %s193, %s196
      %p202 = scmp.eq.s32.totalorder %s16, 0
      %p203 = por %p201, %p202
      %p204 = scmp.ne.s32.totalorder %s193, %s196
      %p205 = scmp.eq.s32.totalorder %s21, 1
      %p206 = por %p204, %p205
      %p207 = scmp.ne.s32.totalorder %s196, %s197
      %p208 = scmp.eq.s32.totalorder %s21, 0
      %p209 = por %p207, %p208
      %p210 = scmp.ne.s32.totalorder %s196, %s197
      %p211 = scmp.eq.s32.totalorder %s22, 1
      %p212 = por %p210, %p211
      %p214 = scmp.ne.s32.totalorder %s197, %s213
      %p215 = scmp.eq.s32.totalorder %s22, 0
      %p216 = por %p214, %p215
      %s217 = ssub.s32 %s16, %s23
      %p218 = scmp.eq.s32.totalorder %s217, 0
      %s220 = sadd.s32 %s219, 1
      %s221 = scalar_select %p218, %s219, %s220
      %p224 = pneg %p218
      %p225 = scmp.eq.s32.totalorder %s16, 1
      %p226 = por %p224, %p225
      %p227 = scmp.ne.s32.totalorder %s219, %s222
      %p228 = scmp.eq.s32.totalorder %s16, 0
      %p229 = por %p227, %p228
      %p230 = scmp.ne.s32.totalorder %s219, %s222
      %p231 = scmp.eq.s32.totalorder %s21, 1
      %p232 = por %p230, %p231
      %p233 = scmp.ne.s32.totalorder %s222, %s223
      %p234 = scmp.eq.s32.totalorder %s21, 0
      %p235 = por %p233, %p234
      %p236 = scmp.ne.s32.totalorder %s222, %s223
      %p237 = scmp.eq.s32.totalorder %s22, 1
      %p238 = por %p236, %p237
      %p240 = scmp.ne.s32.totalorder %s223, %s239
      %p241 = scmp.eq.s32.totalorder %s22, 0
      %p242 = por %p240, %p241
      %p243 = scmp.le.s32.totalorder 1, %s16
      %p244 = scmp.lt.s32.totalorder %s16, 3
      %p245 = pnand %p243, %p244
      %p246 = pneg %p245
      // Predicated region
      $region9: #{tpu_custom_call.1} parent=5 // pred_check
        _
      $region10: #{tpu_custom_call.1} parent=5 // pred_check_branch
        %248 = sbr.rel (%p245) target = $region12
      $region11: #{tpu_custom_call.1} parent=5 // pred_region
        %s249 = ssub.s32 %s16, 1
        // Predicated region
        $region13: #{tpu_custom_call.1} parent=11 // pred_check
          %p250 = pneg %p63
        $region14: #{tpu_custom_call.1} parent=11 // pred_check_branch
          %252 = sbr.rel (%p250) target = $region16
        $region15: #{tpu_custom_call.1} parent=11 // pred_region
          %s254 = ssub.s32 16, 16
          %255 = vsyncadd [#allocation3], %s254
          %s257 = sshll.u32 [#allocation2], 4
          %s258 = int_to_ptr.vmem [resolvable:$true] %s257
          %260 = dma.hbm_to_vmem [thread:$0]  %s1, 16, %s258, [#allocation3]
        $region16: #{tpu_custom_call.1} parent=11 // pred_fallthru
          _
        // Predicated region
        $region17: #{tpu_custom_call.1} parent=11 // pred_check
          %p261 = pneg %p84
        $region18: #{tpu_custom_call.1} parent=11 // pred_check_branch
          %263 = sbr.rel (%p261) target = $region20
        $region19: #{tpu_custom_call.1} parent=11 // pred_region
          _
        $region20: #{tpu_custom_call.1} parent=11 // pred_fallthru
          _
        // Predicated region
        $region21: #{tpu_custom_call.1} parent=11 // pred_check
          %p264 = pneg %p105
        $region22: #{tpu_custom_call.1} parent=11 // pred_check_branch
          %266 = sbr.rel (%p264) target = $region24
        $region23: #{tpu_custom_call.1} parent=11 // pred_region
          _
        $region24: #{tpu_custom_call.1} parent=11 // pred_fallthru
          _
      $region12: #{tpu_custom_call.1} parent=5 // pred_fallthru
        _
      %p267 = scmp.lt.s32.totalorder %s16, 2
      // Predicated region
      $region25: #{tpu_custom_call.1} parent=5 // pred_check
        %p268 = pneg %p267
      $region26: #{tpu_custom_call.1} parent=5 // pred_check_branch
        %270 = sbr.rel (%p268) target = $region28
      $region27: #{tpu_custom_call.1} parent=5 // pred_region
        // Predicated region
        $region29: #{tpu_custom_call.1} parent=27 // pred_check
          %p271 = pneg %p36
        $region30: #{tpu_custom_call.1} parent=27 // pred_check_branch
          %273 = sbr.rel (%p271) target = $region32
        $region31: #{tpu_custom_call.1} parent=27 // pred_region
          %s274 = smul.u32 2, %s16
          %p275 = scmp.lt.s32.totalorder %s274, 3
          %s276 = scalar_select %p275, %s274, 3
          %s277 = smul.addr %s276, 8
          %s278 = scalar_lea.vmem %s0, %s277
          %s279 = smul.u32 2, %s16
        $region32: #{tpu_custom_call.1} parent=27 // pred_fallthru
          _
        // Predicated region
        $region33: #{tpu_custom_call.1} parent=27 // pred_check
          %p280 = pneg %p125
        $region34: #{tpu_custom_call.1} parent=27 // pred_check_branch
          %282 = sbr.rel (%p280) target = $region36
        $region35: #{tpu_custom_call.1} parent=27 // pred_region
          %s283 = smul.u32 2, %s16
          %p284 = scmp.lt.s32.totalorder %s283, 3
          %s285 = scalar_select %p284, %s283, 3
          %s286 = smul.addr %s285, 8
          %s287 = scalar_lea.vmem %s4, %s286
          %s288 = smul.u32 2, %s16
        $region36: #{tpu_custom_call.1} parent=27 // pred_fallthru
          _
        // Predicated region
        $region37: #{tpu_custom_call.1} parent=27 // pred_check
          %p289 = pneg %p151
        $region38: #{tpu_custom_call.1} parent=27 // pred_check_branch
          %291 = sbr.rel (%p289) target = $region40
        $region39: #{tpu_custom_call.1} parent=27 // pred_region
          %s292 = smul.u32 2, %s16
          %p293 = scmp.lt.s32.totalorder %s292, 3
          %s294 = scalar_select %p293, %s292, 3
          %s295 = smul.addr %s294, 8
          %s296 = scalar_lea.vmem %s5, %s295
          %s297 = smul.u32 2, %s16
        $region40: #{tpu_custom_call.1} parent=27 // pred_fallthru
          _
      $region28: #{tpu_custom_call.1} parent=5 // pred_fallthru
        _
      %p298 = scmp.le.s32.totalorder 1, %s16
      %p299 = scmp.lt.s32.totalorder %s16, 3
      %p300 = pnand %p298, %p299
      %p301 = pneg %p300
      // Predicated region
      $region41: #{tpu_custom_call.1} parent=5 // pred_check
        _
      $region42: #{tpu_custom_call.1} parent=5 // pred_check_branch
        %303 = sbr.rel (%p300) target = $region44
      $region43: #{tpu_custom_call.1} parent=5 // pred_region
        %s304 = ssub.s32 %s16, 1
        // Predicated region
        $region45: #{tpu_custom_call.1} parent=43 // pred_check
          %p305 = pneg %p63
        $region46: #{tpu_custom_call.1} parent=43 // pred_check_branch
          %307 = sbr.rel (%p305) target = $region48
        $region47: #{tpu_custom_call.1} parent=43 // pred_region
          %308 = dma.done [#allocation3], 16
        $region48: #{tpu_custom_call.1} parent=43 // pred_fallthru
          _
        %s309 = smul.u32 2, %s21
        %p310 = scmp.lt.s32.totalorder %s309, 3
        %s311 = scalar_select %p310, %s309, 3
        %s312 = smul.addr %s311, 8
        %s313 = scalar_lea.vmem %s0, %s312
        %p314 = pneg %p42
        %p315 = pneg %p39
        %p316 = pneg %p63
        %p317 = pneg %p60
        %p318 = pneg %p84
        %p319 = pneg %p81
        %p320 = pneg %p105
        %p321 = pneg %p102
        %s322 = smul.u32 2, %s21
        %p323 = scmp.lt.s32.totalorder %s322, 3
        %s324 = scalar_select %p323, %s322, 3
        %s325 = smul.addr %s324, 8
        %s326 = scalar_lea.vmem %s4, %s325
        %p327 = pneg %p131
        %p328 = pneg %p128
        %s329 = smul.u32 2, %s21
        %p330 = scmp.lt.s32.totalorder %s329, 3
        %s331 = scalar_select %p330, %s329, 3
        %s332 = smul.addr %s331, 8
        %s333 = scalar_lea.vmem %s5, %s332
        %p334 = pneg %p157
        %p335 = pneg %p154
        %p336 = pneg %p183
        %p337 = pneg %p180
        %s338 = sand.u32 %s170, 1
        %s339 = sand.u32 %s170, 1
        %s340 = smul.addr %s339, 32
        %s341 = scalar_lea.vmem [#allocation4], %s340
        %p342 = pneg %p209
        %p343 = pneg %p206
        %s344 = sand.u32 %s196, 1
        %s345 = sand.u32 %s196, 1
        %s346 = smul.addr %s345, 32
        %s347 = scalar_lea.vmem [#allocation5], %s346
        %p348 = pneg %p235
        %p349 = pneg %p232
        %s350 = sand.u32 %s222, 1
        %s351 = sand.u32 %s222, 1
        %s352 = smul.addr %s351, 32
        %s353 = scalar_lea.vmem [#allocation6], %s352
        %s354 = smul.u32 2, %s21
        %p355 = scmp.lt.s32.totalorder %s354, 3
        %s356 = scalar_select %p355, %s354, 3
        %s357 = smul.addr %s356, 8
        %s358 = scalar_lea.vmem %s0, %s357
        %s359 = smul.u32 2, %s21
        %s360 = smul.u32 2, %s21
        %p361 = scmp.lt.s32.totalorder %s360, 3
        %s362 = scalar_select %p361, %s360, 3
        %s363 = smul.addr %s362, 8
        %s364 = scalar_lea.vmem %s4, %s363
        %s365 = smul.u32 2, %s21
        %s366 = smul.u32 2, %s21
        %p367 = scmp.lt.s32.totalorder %s366, 3
        %s368 = scalar_select %p367, %s366, 3
        %s369 = smul.addr %s368, 8
        %s370 = scalar_lea.vmem %s5, %s369
        %s371 = smul.u32 2, %s21
        %s372 = smul.u32 2, %s21
        %s373 = smul.u32 2, %s21
        %s374 = smul.u32 2, %s21
        %v376 = vld [vmem:[%s358] sm:$0xff]
        %v377 = vld [vmem:[%s358 + $0x8] sm:$0xff]
        %v378 = vmul.f32 %v376, %v376
        %v379 = vmul.f32 %v377, %v377
        %vm380 = vcmask 523264
        %v381 = vsel %vm380, %v378, 0.0
        %382 = vadd.xlane.f32.xlu0 %v381
        %v383 = vpop.xlane.xlu0 %382
        %v384 = vsel %vm380, %v379, 0.0
        %385 = vadd.xlane.f32.xlu0 %v384
        %v386 = vpop.xlane.xlu0 %385
        %v387 = vrcp.pop 64.0
        %v388 = vmul.f32 %v383, %v387
        %v389 = vmul.f32 %v386, %v387
        %v390 = vadd.f32 %v388, 1e-06
        %v391 = vadd.f32 %v389, 1e-06
        %v392 = vrsqrt.pop %v390
        %v393 = vrsqrt.pop %v391
        %v394 = vmul.f32 %v376, %v392
        %v395 = vmul.f32 %v377, %v393
        %v396 = vld [vmem:[#allocation2] sm:$0x1]
        %v398 = vlaneseq
        %v399 = vshrl.u32 %v398, 7
        %v400 = vsub.s32 0, %v399
        %v401 = vrot.slane %v396, %v400
        %v403 = vmul.f32 %v394, %v401
        %v404 = vmul.f32 %v395, %v401
        %v405 = vpack.c.bf16 %v404, %v403
        %v406 = vld [vmem:[%s2] sm:$0xff]
        %v407 = vld [vmem:[%s2 + $0x8] sm:$0xff]
        %v408 = vld [vmem:[%s2 + $0x10] sm:$0xff]
        %v409 = vld [vmem:[%s2 + $0x18] sm:$0xff]
        %v410 = vld [vmem:[%s2 + $0x20] sm:$0xff]
        %v411 = vld [vmem:[%s2 + $0x28] sm:$0xff]
        %v412 = vld [vmem:[%s2 + $0x30] sm:$0xff]
        %v413 = vld [vmem:[%s2 + $0x38] sm:$0xff]
        %v414 = vld [vmem:[%s3] sm:$0x3]
        %v416 = vlaneseq
        %v417 = vshrl.u32 %v416, 7
        %v418 = vsub.s32 0, %v417
        %v419 = vrot.slane %v414, %v418
        %v420 = vlaneseq
        %v421 = vshrl.u32 %v420, 7
        %v422 = vsub.s32 1, %v421
        %v423 = vrot.slane %v414, %v422
        %v434 = vunpack.c.l.b16 %v406
        %v435 = vunpack.c.h.b16 %v406
        %v436 = vunpack.c.l.b16 %v407
        %v437 = vunpack.c.h.b16 %v407
        %v438 = vunpack.c.l.b16 %v408
        %v439 = vunpack.c.h.b16 %v408
        %v440 = vunpack.c.l.b16 %v409
        %v441 = vunpack.c.h.b16 %v409
        %v442 = vunpack.c.l.b16 %v410
        %v443 = vunpack.c.h.b16 %v410
        %v444 = vunpack.c.l.b16 %v411
        %v445 = vunpack.c.h.b16 %v411
        %v446 = vunpack.c.l.b16 %v412
        %v447 = vunpack.c.h.b16 %v412
        %v448 = vunpack.c.l.b16 %v413
        %v449 = vunpack.c.h.b16 %v413
        %v450 = vpack.c.b16 %v436, %v434
        %v451 = vpack.c.b16 %v437, %v435
        %v452 = vpack.c.b16 %v440, %v438
        %v453 = vpack.c.b16 %v441, %v439
        %v454 = vpack.c.b16 %v444, %v442
        %v455 = vpack.c.b16 %v445, %v443
        %v456 = vpack.c.b16 %v448, %v446
        %v457 = vpack.c.b16 %v449, %v447
        %v467 = vsel %vm380, %v405, 0
        %469 = vmatprep.subr.bf16.mxu0 %v451
        %470 = vmatpush1.bf16.msra.mxu0 %v450
        %471 = vmatprep.subr.bf16.mxu0 %v453
        %472 = vmatpush1.bf16.msra.mxu0 %v452
        %473 = vmatprep.subr.bf16.mxu0 %v455
        %474 = vmatpush1.bf16.msra.mxu0 %v454
        %475 = vmatprep.subr.bf16.mxu0 %v457
        %476 = vmatpush1.bf16.msra.mxu0 %v456
        %477 = vmatprep.subr.bf16.mxu0 0
        %478 = vmatpush1.bf16.msra.mxu0 0
        %479 = vmatprep.subr.bf16.mxu0 0
        %480 = vmatpush1.bf16.msra.mxu0 0
        %481 = vmatprep.subr.bf16.mxu0 0
        %482 = vmatpush1.bf16.msra.mxu0 0
        %483 = vmatprep.subr.bf16.mxu0 0
        %484 = vmatpush1.bf16.msra.mxu0 0
        %485 = vmatprep.subr.bf16.mxu0 0
        %486 = vmatpush1.bf16.msra.mxu0 0
        %487 = vmatprep.subr.bf16.mxu0 0
        %488 = vmatpush1.bf16.msra.mxu0 0
        %489 = vmatprep.subr.bf16.mxu0 0
        %490 = vmatpush1.bf16.msra.mxu0 0
        %491 = vmatprep.subr.bf16.mxu0 0
        %492 = vmatpush1.bf16.msra.mxu0 0
        %493 = vmatprep.subr.bf16.mxu0 0
        %494 = vmatpush1.bf16.msra.mxu0 0
        %495 = vmatprep.subr.bf16.mxu0 0
        %496 = vmatpush1.bf16.msra.mxu0 0
        %497 = vmatprep.subr.bf16.mxu0 0
        %498 = vmatpush1.bf16.msra.mxu0 0
        %499 = vmatprep.subr.bf16.mxu0 0
        %500 = vmatpush1.bf16.msra.mxu0 0
        %501 = vmatprep.mubr.bf16.mxu0 0
        %502 = vmatmul.mubr.bf16.gmra.mrb[0].mxu0 %v467
        %v503 = vpop.f32.mrb[0].mxu0
        %v504 = vadd.f32 %v419, %v503
        %v505 = vpop.f32.mrb[0].mxu0
        %v506 = vadd.f32 %v423, %v505
        %v507 = vpop.f32.mrb[0].mxu0
        %v508 = vadd.f32 %v419, %v507
        %v509 = vpop.f32.mrb[0].mxu0
        %v510 = vadd.f32 %v423, %v509
        %511 = vdwg.mxu0
        %514 = vrot.lane.b32.xlu0 %v504, 112
        %v515 = vpop.permute.xlu0 %514
        %516 = vrot.lane.b32.xlu0 %v508, 112
        %v517 = vpop.permute.xlu0 %516
        %520 = vrot.lane.b32.xlu0 %v504, 96
        %v521 = vpop.permute.xlu0 %520
        %522 = vrot.lane.b32.xlu0 %v508, 96
        %v523 = vpop.permute.xlu0 %522
        %526 = vrot.lane.b32.xlu0 %v504, 80
        %v527 = vpop.permute.xlu0 %526
        %528 = vrot.lane.b32.xlu0 %v508, 80
        %v529 = vpop.permute.xlu0 %528
        %534 = vrot.lane.b32.xlu0 %v506, 112
        %v535 = vpop.permute.xlu0 %534
        %536 = vrot.lane.b32.xlu0 %v510, 112
        %v537 = vpop.permute.xlu0 %536
        %540 = vrot.lane.b32.xlu0 %v506, 96
        %v541 = vpop.permute.xlu0 %540
        %542 = vrot.lane.b32.xlu0 %v510, 96
        %v543 = vpop.permute.xlu0 %542
        %546 = vrot.lane.b32.xlu0 %v506, 80
        %v547 = vpop.permute.xlu0 %546
        %548 = vrot.lane.b32.xlu0 %v510, 80
        %v549 = vpop.permute.xlu0 %548
        %v552 = vld [vmem:[%s364] sm:$0xff]
        %v553 = vld [vmem:[%s364 + $0x8] sm:$0xff]
        %v554 = vld [vmem:[%s370] sm:$0xff]
        %v555 = vld [vmem:[%s370 + $0x8] sm:$0xff]
        %v556 = vmul.f32 %v504, %v552
        %v557 = vmul.f32 %v508, %v553
        %v558 = vmul.f32 %v515, %v552
        %v559 = vmul.f32 %v517, %v553
        %v560 = vmul.f32 %v521, %v552
        %v561 = vmul.f32 %v523, %v553
        %v562 = vmul.f32 %v527, %v552
        %v563 = vmul.f32 %v529, %v553
        %564 = vrot.lane.b32.xlu0 %v504, 120
        %v565 = vpop.permute.xlu0 %564
        %566 = vrot.lane.b32.xlu0 %v508, 120
        %v567 = vpop.permute.xlu0 %566
        %568 = vrot.lane.b32.xlu0 %v515, 120
        %v569 = vpop.permute.xlu0 %568
        %570 = vrot.lane.b32.xlu0 %v517, 120
        %v571 = vpop.permute.xlu0 %570
        %572 = vrot.lane.b32.xlu0 %v521, 120
        %v573 = vpop.permute.xlu0 %572
        %574 = vrot.lane.b32.xlu0 %v523, 120
        %v575 = vpop.permute.xlu0 %574
        %576 = vrot.lane.b32.xlu0 %v527, 120
        %v577 = vpop.permute.xlu0 %576
        %578 = vrot.lane.b32.xlu0 %v529, 120
        %v579 = vpop.permute.xlu0 %578
        %588 = vrot.lane.b32.xlu0 %v504, 8
        %v589 = vpop.permute.xlu0 %588
        %590 = vrot.lane.b32.xlu0 %v508, 8
        %v591 = vpop.permute.xlu0 %590
        %592 = vrot.lane.b32.xlu0 %v515, 8
        %v593 = vpop.permute.xlu0 %592
        %594 = vrot.lane.b32.xlu0 %v517, 8
        %v595 = vpop.permute.xlu0 %594
        %596 = vrot.lane.b32.xlu0 %v521, 8
        %v597 = vpop.permute.xlu0 %596
        %598 = vrot.lane.b32.xlu0 %v523, 8
        %v599 = vpop.permute.xlu0 %598
        %600 = vrot.lane.b32.xlu0 %v527, 8
        %v601 = vpop.permute.xlu0 %600
        %602 = vrot.lane.b32.xlu0 %v529, 8
        %v603 = vpop.permute.xlu0 %602
        %vm612 = vcmask 64512
        %v613 = vsel %vm612, %v565, %v589
        %v614 = vsel %vm612, %v567, %v591
        %v615 = vsel %vm612, %v569, %v593
        %v616 = vsel %vm612, %v571, %v595
        %v617 = vsel %vm612, %v573, %v597
        %v618 = vsel %vm612, %v575, %v599
        %v619 = vsel %vm612, %v577, %v601
        %v620 = vsel %vm612, %v579, %v603
        %v621 = vmul.f32 %v613, %v554
        %v622 = vmul.f32 %v614, %v555
        %v623 = vmul.f32 %v615, %v554
        %v624 = vmul.f32 %v616, %v555
        %v625 = vmul.f32 %v617, %v554
        %v626 = vmul.f32 %v618, %v555
        %v627 = vmul.f32 %v619, %v554
        %v628 = vmul.f32 %v620, %v555
        %v629 = vadd.f32 %v556, %v621
        %v630 = vadd.f32 %v557, %v622
        %v631 = vadd.f32 %v558, %v623
        %v632 = vadd.f32 %v559, %v624
        %v633 = vadd.f32 %v560, %v625
        %v634 = vadd.f32 %v561, %v626
        %v635 = vadd.f32 %v562, %v627
        %v636 = vadd.f32 %v563, %v628
        %v637 = vpack.c.bf16 %v630, %v629
        %v638 = vpack.c.bf16 %v632, %v631
        %v639 = vpack.c.bf16 %v634, %v633
        %v640 = vpack.c.bf16 %v636, %v635
        %v645 = vunpack.c.l.b16 %v637
        %v646 = vunpack.c.h.b16 %v637
        %v647 = vunpack.c.l.b16 %v638
        %v648 = vunpack.c.h.b16 %v638
        %v649 = vunpack.c.l.b16 %v639
        %v650 = vunpack.c.h.b16 %v639
        %v651 = vunpack.c.l.b16 %v640
        %v652 = vunpack.c.h.b16 %v640
        %v653 = vpack.c.b16 %v645, %v645
        %v654 = vpack.c.b16 %v646, %v646
        %v655 = vpack.c.b16 %v647, %v647
        %v656 = vpack.c.b16 %v648, %v648
        %v657 = vpack.c.b16 %v649, %v649
        %v658 = vpack.c.b16 %v650, %v650
        %v659 = vpack.c.b16 %v651, %v651
        %v660 = vpack.c.b16 %v652, %v652
        %vm669 = vcmask 125952
        %670 = vst.msk [vmem:[%s341] sm:$0xf] %vm669, %v653
        %671 = vst.msk [vmem:[%s341 + $0x4] sm:$0xf] %vm669, %v654
        %672 = vst.msk [vmem:[%s341 + $0x8] sm:$0xf] %vm669, %v655
        %673 = vst.msk [vmem:[%s341 + $0xc] sm:$0xf] %vm669, %v656
        %674 = vst.msk [vmem:[%s341 + $0x10] sm:$0xf] %vm669, %v657
        %675 = vst.msk [vmem:[%s341 + $0x14] sm:$0xf] %vm669, %v658
        %676 = vst.msk [vmem:[%s341 + $0x18] sm:$0xf] %vm669, %v659
        %677 = vst.msk [vmem:[%s341 + $0x1c] sm:$0xf] %vm669, %v660
        %680 = vrot.lane.b32.xlu0 %v552, 64
        %v681 = vpop.permute.xlu0 %680
        %682 = vrot.lane.b32.xlu0 %v553, 64
        %v683 = vpop.permute.xlu0 %682
        %v686 = vmul.f32 %v504, %v681
        %v687 = vmul.f32 %v508, %v683
        %v688 = vmul.f32 %v515, %v681
        %v689 = vmul.f32 %v517, %v683
        %v690 = vmul.f32 %v521, %v681
        %v691 = vmul.f32 %v523, %v683
        %v692 = vmul.f32 %v527, %v681
        %v693 = vmul.f32 %v529, %v683
        %694 = vrot.lane.b32.xlu0 %v504, 56
        %v695 = vpop.permute.xlu0 %694
        %696 = vrot.lane.b32.xlu0 %v508, 56
        %v697 = vpop.permute.xlu0 %696
        %698 = vrot.lane.b32.xlu0 %v515, 56
        %v699 = vpop.permute.xlu0 %698
        %700 = vrot.lane.b32.xlu0 %v517, 56
        %v701 = vpop.permute.xlu0 %700
        %702 = vrot.lane.b32.xlu0 %v521, 56
        %v703 = vpop.permute.xlu0 %702
        %704 = vrot.lane.b32.xlu0 %v523, 56
        %v705 = vpop.permute.xlu0 %704
        %706 = vrot.lane.b32.xlu0 %v527, 56
        %v707 = vpop.permute.xlu0 %706
        %708 = vrot.lane.b32.xlu0 %v529, 56
        %v709 = vpop.permute.xlu0 %708
        %718 = vrot.lane.b32.xlu0 %v504, 72
        %v719 = vpop.permute.xlu0 %718
        %720 = vrot.lane.b32.xlu0 %v508, 72
        %v721 = vpop.permute.xlu0 %720
        %722 = vrot.lane.b32.xlu0 %v515, 72
        %v723 = vpop.permute.xlu0 %722
        %724 = vrot.lane.b32.xlu0 %v517, 72
        %v725 = vpop.permute.xlu0 %724
        %726 = vrot.lane.b32.xlu0 %v521, 72
        %v727 = vpop.permute.xlu0 %726
        %728 = vrot.lane.b32.xlu0 %v523, 72
        %v729 = vpop.permute.xlu0 %728
        %730 = vrot.lane.b32.xlu0 %v527, 72
        %v731 = vpop.permute.xlu0 %730
        %732 = vrot.lane.b32.xlu0 %v529, 72
        %v733 = vpop.permute.xlu0 %732
        %v742 = vsel %vm612, %v695, %v719
        %v743 = vsel %vm612, %v697, %v721
        %v744 = vsel %vm612, %v699, %v723
        %v745 = vsel %vm612, %v701, %v725
        %v746 = vsel %vm612, %v703, %v727
        %v747 = vsel %vm612, %v705, %v729
        %v748 = vsel %vm612, %v707, %v731
        %v749 = vsel %vm612, %v709, %v733
        %v750 = vmul.f32 %v742, %v554
        %v751 = vmul.f32 %v743, %v555
        %v752 = vmul.f32 %v744, %v554
        %v753 = vmul.f32 %v745, %v555
        %v754 = vmul.f32 %v746, %v554
        %v755 = vmul.f32 %v747, %v555
        %v756 = vmul.f32 %v748, %v554
        %v757 = vmul.f32 %v749, %v555
        %766 = vrot.lane.b32.xlu0 %v750, 64
        %v767 = vpop.permute.xlu0 %766
        %768 = vrot.lane.b32.xlu0 %v751, 64
        %v769 = vpop.permute.xlu0 %768
        %770 = vrot.lane.b32.xlu0 %v752, 64
        %v771 = vpop.permute.xlu0 %770
        %772 = vrot.lane.b32.xlu0 %v753, 64
        %v773 = vpop.permute.xlu0 %772
        %774 = vrot.lane.b32.xlu0 %v754, 64
        %v775 = vpop.permute.xlu0 %774
        %776 = vrot.lane.b32.xlu0 %v755, 64
        %v777 = vpop.permute.xlu0 %776
        %778 = vrot.lane.b32.xlu0 %v756, 64
        %v779 = vpop.permute.xlu0 %778
        %780 = vrot.lane.b32.xlu0 %v757, 64
        %v781 = vpop.permute.xlu0 %780
        %v790 = vadd.f32 %v686, %v767
        %v791 = vadd.f32 %v687, %v769
        %v792 = vadd.f32 %v688, %v771
        %v793 = vadd.f32 %v689, %v773
        %v794 = vadd.f32 %v690, %v775
        %v795 = vadd.f32 %v691, %v777
        %v796 = vadd.f32 %v692, %v779
        %v797 = vadd.f32 %v693, %v781
        %v798 = vpack.c.bf16 %v791, %v790
        %v799 = vpack.c.bf16 %v793, %v792
        %v800 = vpack.c.bf16 %v795, %v794
        %v801 = vpack.c.bf16 %v797, %v796
        %v806 = vunpack.c.l.b16 %v798
        %v807 = vunpack.c.h.b16 %v798
        %v808 = vunpack.c.l.b16 %v799
        %v809 = vunpack.c.h.b16 %v799
        %v810 = vunpack.c.l.b16 %v800
        %v811 = vunpack.c.h.b16 %v800
        %v812 = vunpack.c.l.b16 %v801
        %v813 = vunpack.c.h.b16 %v801
        %v814 = vpack.c.b16 %v806, %v806
        %v815 = vpack.c.b16 %v807, %v807
        %v816 = vpack.c.b16 %v808, %v808
        %v817 = vpack.c.b16 %v809, %v809
        %v818 = vpack.c.b16 %v810, %v810
        %v819 = vpack.c.b16 %v811, %v811
        %v820 = vpack.c.b16 %v812, %v812
        %v821 = vpack.c.b16 %v813, %v813
        %822 = vrot.lane.b32.xlu0 %v814, 64
        %v823 = vpop.permute.xlu0 %822
        %824 = vrot.lane.b32.xlu0 %v815, 64
        %v825 = vpop.permute.xlu0 %824
        %826 = vrot.lane.b32.xlu0 %v816, 64
        %v827 = vpop.permute.xlu0 %826
        %828 = vrot.lane.b32.xlu0 %v817, 64
        %v829 = vpop.permute.xlu0 %828
        %830 = vrot.lane.b32.xlu0 %v818, 64
        %v831 = vpop.permute.xlu0 %830
        %832 = vrot.lane.b32.xlu0 %v819, 64
        %v833 = vpop.permute.xlu0 %832
        %834 = vrot.lane.b32.xlu0 %v820, 64
        %v835 = vpop.permute.xlu0 %834
        %836 = vrot.lane.b32.xlu0 %v821, 64
        %v837 = vpop.permute.xlu0 %836
        %846 = vst.msk [vmem:[%s347] sm:$0xf] %vm669, %v823
        %847 = vst.msk [vmem:[%s347 + $0x4] sm:$0xf] %vm669, %v825
        %848 = vst.msk [vmem:[%s347 + $0x8] sm:$0xf] %vm669, %v827
        %849 = vst.msk [vmem:[%s347 + $0xc] sm:$0xf] %vm669, %v829
        %850 = vst.msk [vmem:[%s347 + $0x10] sm:$0xf] %vm669, %v831
        %851 = vst.msk [vmem:[%s347 + $0x14] sm:$0xf] %vm669, %v833
        %852 = vst.msk [vmem:[%s347 + $0x18] sm:$0xf] %vm669, %v835
        %853 = vst.msk [vmem:[%s347 + $0x1c] sm:$0xf] %vm669, %v837
        %v854 = vpack.c.bf16 %v510, %v506
        %v855 = vpack.c.bf16 %v537, %v535
        %v856 = vpack.c.bf16 %v543, %v541
        %v857 = vpack.c.bf16 %v549, %v547
        %v862 = vunpack.c.l.b16 %v854
        %v863 = vunpack.c.h.b16 %v854
        %v864 = vunpack.c.l.b16 %v855
        %v865 = vunpack.c.h.b16 %v855
        %v866 = vunpack.c.l.b16 %v856
        %v867 = vunpack.c.h.b16 %v856
        %v868 = vunpack.c.l.b16 %v857
        %v869 = vunpack.c.h.b16 %v857
        %v870 = vpack.c.b16 %v862, %v862
        %v871 = vpack.c.b16 %v863, %v863
        %v872 = vpack.c.b16 %v864, %v864
        %v873 = vpack.c.b16 %v865, %v865
        %v874 = vpack.c.b16 %v866, %v866
        %v875 = vpack.c.b16 %v867, %v867
        %v876 = vpack.c.b16 %v868, %v868
        %v877 = vpack.c.b16 %v869, %v869
        %886 = vst.msk [vmem:[%s353] sm:$0xf] %vm669, %v870
        %887 = vst.msk [vmem:[%s353 + $0x4] sm:$0xf] %vm669, %v871
        %888 = vst.msk [vmem:[%s353 + $0x8] sm:$0xf] %vm669, %v872
        %889 = vst.msk [vmem:[%s353 + $0xc] sm:$0xf] %vm669, %v873
        %890 = vst.msk [vmem:[%s353 + $0x10] sm:$0xf] %vm669, %v874
        %891 = vst.msk [vmem:[%s353 + $0x14] sm:$0xf] %vm669, %v875
        %892 = vst.msk [vmem:[%s353 + $0x18] sm:$0xf] %vm669, %v876
        %893 = vst.msk [vmem:[%s353 + $0x1c] sm:$0xf] %vm669, %v877
        %s894 = sand.u32 %s170, 1
        %s895 = sand.u32 %s170, 1
        %s896 = smul.addr %s895, 32
        %s897 = scalar_lea.vmem [#allocation4], %s896
        %s898 = sand.u32 %s196, 1
        %s899 = sand.u32 %s196, 1
        %s900 = smul.addr %s899, 32
        %s901 = scalar_lea.vmem [#allocation5], %s900
        %s902 = sand.u32 %s222, 1
        %s903 = sand.u32 %s222, 1
        %s904 = smul.addr %s903, 32
        %s905 = scalar_lea.vmem [#allocation6], %s904
        // Predicated region
        $region49: #{tpu_custom_call.1} parent=43 // pred_check
          %p906 = pneg %p180
        $region50: #{tpu_custom_call.1} parent=43 // pred_check_branch
          %908 = sbr.rel (%p906) target = $region52
        $region51: #{tpu_custom_call.1} parent=43 // pred_region
          %s909 = smul.u32 2, %s21
          %s910 = smul.addr %s909, 4
          %s911 = scalar_lea.vmem %s6, %s910
          // Predicated region
          $region53: #{tpu_custom_call.1} parent=51 // pred_check
            _
          $region54: #{tpu_custom_call.1} parent=51 // pred_check_branch
            %913 = sbr.rel (0) target = $region56
          $region55: #{tpu_custom_call.1} parent=51 // pred_region
            // Predicated region
            $region57: #{tpu_custom_call.1} parent=55 // pred_check
              _
            $region58: #{tpu_custom_call.1} parent=55 // pred_check_branch
              %915 = sbr.rel target = $region60
            $region59: #{tpu_custom_call.1} parent=55 // pred_region
              // Predicated region
              $region72: #{tpu_custom_call.1} parent=59 // pred_check
                _
              $region73: #{tpu_custom_call.1} parent=59 // pred_check_branch
                %944 = sbr.rel (0) target = $region75
              $region74: #{tpu_custom_call.1} parent=59 // pred_region
                loop: start=0, step=1, limit=1
                $region76: #{tpu_custom_call.1} parent=74 // loop_pre_header
                  _
                $region77: #{tpu_custom_call.1} parent=74 // loop_header
                  %s946 = sphi 0, %s950
                  %p947 = scmp.ge.s32.totalorder %s946, 1
                  %s951 = sphi %s897, %s897
                  %s952 = sphi %s911, %s911
                $region78: #{tpu_custom_call.1} parent=74 // loop_header_branch
                  %949 = sbr.rel (%p947) target = $region82
                $region79: #{tpu_custom_call.1} parent=74 // loop_body
                  _
                $region80: #{tpu_custom_call.1} parent=74 // loop_footer
                  %s950 = sadd.s32 1, %s946
                $region81: #{tpu_custom_call.1} parent=74 // loop_footer_branch
                  %945 = sbr.rel target = $region77
                $region82: #{tpu_custom_call.1} parent=74 // loop_exit
                  _
                loop: start=0, step=1, limit=1
                $region83: #{tpu_custom_call.1} parent=74 // loop_pre_header
                  _
                $region84: #{tpu_custom_call.1} parent=74 // loop_header
                  %s955 = sphi 0, %s959
                  %p956 = scmp.ge.s32.totalorder %s955, 1
                  %s960 = sphi %s897, %s897
                  %s961 = sphi %s911, %s911
                $region85: #{tpu_custom_call.1} parent=74 // loop_header_branch
                  %958 = sbr.rel (%p956) target = $region89
                $region86: #{tpu_custom_call.1} parent=74 // loop_body
                  %v962 = vld [vmem:[%s960] sm:$0xf]
                  %963 = vst [vmem:[%s961] sm:$0xf] %v962
                  %v964 = vld [vmem:[%s960 + $0x4] sm:$0xf]
                  %965 = vst [vmem:[%s961 + $0x4] sm:$0xf] %v964
                  %v966 = vld [vmem:[%s960 + $0x8] sm:$0xf]
                  %967 = vst [vmem:[%s961 + $0x10] sm:$0xf] %v966
                  %v968 = vld [vmem:[%s960 + $0xc] sm:$0xf]
                  %969 = vst [vmem:[%s961 + $0x14] sm:$0xf] %v968
                  %v970 = vld [vmem:[%s960 + $0x10] sm:$0xf]
                  %971 = vst [vmem:[%s961 + $0x20] sm:$0xf] %v970
                  %v972 = vld [vmem:[%s960 + $0x14] sm:$0xf]
                  %973 = vst [vmem:[%s961 + $0x24] sm:$0xf] %v972
                  %v974 = vld [vmem:[%s960 + $0x18] sm:$0xf]
                  %975 = vst [vmem:[%s961 + $0x30] sm:$0xf] %v974
                  %v976 = vld [vmem:[%s960 + $0x1c] sm:$0xf]
                  %977 = vst [vmem:[%s961 + $0x34] sm:$0xf] %v976
                $region87: #{tpu_custom_call.1} parent=74 // loop_footer
                  %s959 = sadd.s32 1, %s955
                $region88: #{tpu_custom_call.1} parent=74 // loop_footer_branch
                  %954 = sbr.rel target = $region84
                $region89: #{tpu_custom_call.1} parent=74 // loop_exit
                  _
              $region75: #{tpu_custom_call.1} parent=59 // pred_fallthru
                _
            $region60: #{tpu_custom_call.1} parent=55 // pred_fallthru
              _
            // Predicated region
            $region61: #{tpu_custom_call.1} parent=55 // pred_check
              _
            $region62: #{tpu_custom_call.1} parent=55 // pred_check_branch
              %917 = sbr.rel (0) target = $region64
            $region63: #{tpu_custom_call.1} parent=55 // pred_region
              loop: start=0, step=1, limit=1
              $region65: #{tpu_custom_call.1} parent=63 // loop_pre_header
                _
              $region66: #{tpu_custom_call.1} parent=63 // loop_header
                %s920 = sphi 0, %s924
                %p921 = scmp.ge.s32.totalorder %s920, 1
                %s925 = sphi %s897, %s897
                %s926 = sphi %s911, %s911
              $region67: #{tpu_custom_call.1} parent=63 // loop_header_branch
                %923 = sbr.rel (%p921) target = $region71
              $region68: #{tpu_custom_call.1} parent=63 // loop_body
                %v927 = vld [vmem:[%s925] sm:$0xf]
                %928 = vst [vmem:[%s926] sm:$0xf] %v927
                %v929 = vld [vmem:[%s925 + $0x4] sm:$0xf]
                %930 = vst [vmem:[%s926 + $0x4] sm:$0xf] %v929
                %v931 = vld [vmem:[%s925 + $0x8] sm:$0xf]
                %932 = vst [vmem:[%s926 + $0x10] sm:$0xf] %v931
                %v933 = vld [vmem:[%s925 + $0xc] sm:$0xf]
                %934 = vst [vmem:[%s926 + $0x14] sm:$0xf] %v933
                %v935 = vld [vmem:[%s925 + $0x10] sm:$0xf]
                %936 = vst [vmem:[%s926 + $0x20] sm:$0xf] %v935
                %v937 = vld [vmem:[%s925 + $0x14] sm:$0xf]
                %938 = vst [vmem:[%s926 + $0x24] sm:$0xf] %v937
                %v939 = vld [vmem:[%s925 + $0x18] sm:$0xf]
                %940 = vst [vmem:[%s926 + $0x30] sm:$0xf] %v939
                %v941 = vld [vmem:[%s925 + $0x1c] sm:$0xf]
                %942 = vst [vmem:[%s926 + $0x34] sm:$0xf] %v941
              $region69: #{tpu_custom_call.1} parent=63 // loop_footer
                %s924 = sadd.s32 1, %s920
              $region70: #{tpu_custom_call.1} parent=63 // loop_footer_branch
                %919 = sbr.rel target = $region66
              $region71: #{tpu_custom_call.1} parent=63 // loop_exit
                _
            $region64: #{tpu_custom_call.1} parent=55 // pred_fallthru
              _
          $region56: #{tpu_custom_call.1} parent=51 // pred_fallthru
            _
          %978 = vnop
        $region52: #{tpu_custom_call.1} parent=43 // pred_fallthru
          _
        // Predicated region
        $region90: #{tpu_custom_call.1} parent=43 // pred_check
          %p979 = pneg %p206
        $region91: #{tpu_custom_call.1} parent=43 // pred_check_branch
          %981 = sbr.rel (%p979) target = $region93
        $region92: #{tpu_custom_call.1} parent=43 // pred_region
          %s982 = smul.u32 2, %s21
          %s983 = smul.addr %s982, 4
          %s984 = scalar_lea.vmem %s7, %s983
          // Predicated region
          $region94: #{tpu_custom_call.1} parent=92 // pred_check
            _
          $region95: #{tpu_custom_call.1} parent=92 // pred_check_branch
            %986 = sbr.rel (0) target = $region97
          $region96: #{tpu_custom_call.1} parent=92 // pred_region
            // Predicated region
            $region98: #{tpu_custom_call.1} parent=96 // pred_check
              _
            $region99: #{tpu_custom_call.1} parent=96 // pred_check_branch
              %988 = sbr.rel target = $region101
            $region100: #{tpu_custom_call.1} parent=96 // pred_region
              // Predicated region
              $region113: #{tpu_custom_call.1} parent=100 // pred_check
                _
              $region114: #{tpu_custom_call.1} parent=100 // pred_check_branch
                %1017 = sbr.rel (0) target = $region116
              $region115: #{tpu_custom_call.1} parent=100 // pred_region
                loop: start=0, step=1, limit=1
                $region117: #{tpu_custom_call.1} parent=115 // loop_pre_header
                  _
                $region118: #{tpu_custom_call.1} parent=115 // loop_header
                  %s1019 = sphi 0, %s1023
                  %p1020 = scmp.ge.s32.totalorder %s1019, 1
                  %s1024 = sphi %s901, %s901
                  %s1025 = sphi %s984, %s984
                $region119: #{tpu_custom_call.1} parent=115 // loop_header_branch
                  %1022 = sbr.rel (%p1020) target = $region123
                $region120: #{tpu_custom_call.1} parent=115 // loop_body
                  _
                $region121: #{tpu_custom_call.1} parent=115 // loop_footer
                  %s1023 = sadd.s32 1, %s1019
                $region122: #{tpu_custom_call.1} parent=115 // loop_footer_branch
                  %1018 = sbr.rel target = $region118
                $region123: #{tpu_custom_call.1} parent=115 // loop_exit
                  _
                loop: start=0, step=1, limit=1
                $region124: #{tpu_custom_call.1} parent=115 // loop_pre_header
                  _
                $region125: #{tpu_custom_call.1} parent=115 // loop_header
                  %s1028 = sphi 0, %s1032
                  %p1029 = scmp.ge.s32.totalorder %s1028, 1
                  %s1033 = sphi %s901, %s901
                  %s1034 = sphi %s984, %s984
                $region126: #{tpu_custom_call.1} parent=115 // loop_header_branch
                  %1031 = sbr.rel (%p1029) target = $region130
                $region127: #{tpu_custom_call.1} parent=115 // loop_body
                  %v1035 = vld [vmem:[%s1033] sm:$0xf]
                  %1036 = vst [vmem:[%s1034] sm:$0xf] %v1035
                  %v1037 = vld [vmem:[%s1033 + $0x4] sm:$0xf]
                  %1038 = vst [vmem:[%s1034 + $0x4] sm:$0xf] %v1037
                  %v1039 = vld [vmem:[%s1033 + $0x8] sm:$0xf]
                  %1040 = vst [vmem:[%s1034 + $0x10] sm:$0xf] %v1039
                  %v1041 = vld [vmem:[%s1033 + $0xc] sm:$0xf]
                  %1042 = vst [vmem:[%s1034 + $0x14] sm:$0xf] %v1041
                  %v1043 = vld [vmem:[%s1033 + $0x10] sm:$0xf]
                  %1044 = vst [vmem:[%s1034 + $0x20] sm:$0xf] %v1043
                  %v1045 = vld [vmem:[%s1033 + $0x14] sm:$0xf]
                  %1046 = vst [vmem:[%s1034 + $0x24] sm:$0xf] %v1045
                  %v1047 = vld [vmem:[%s1033 + $0x18] sm:$0xf]
                  %1048 = vst [vmem:[%s1034 + $0x30] sm:$0xf] %v1047
                  %v1049 = vld [vmem:[%s1033 + $0x1c] sm:$0xf]
                  %1050 = vst [vmem:[%s1034 + $0x34] sm:$0xf] %v1049
                $region128: #{tpu_custom_call.1} parent=115 // loop_footer
                  %s1032 = sadd.s32 1, %s1028
                $region129: #{tpu_custom_call.1} parent=115 // loop_footer_branch
                  %1027 = sbr.rel target = $region125
                $region130: #{tpu_custom_call.1} parent=115 // loop_exit
                  _
              $region116: #{tpu_custom_call.1} parent=100 // pred_fallthru
                _
            $region101: #{tpu_custom_call.1} parent=96 // pred_fallthru
              _
            // Predicated region
            $region102: #{tpu_custom_call.1} parent=96 // pred_check
              _
            $region103: #{tpu_custom_call.1} parent=96 // pred_check_branch
              %990 = sbr.rel (0) target = $region105
            $region104: #{tpu_custom_call.1} parent=96 // pred_region
              loop: start=0, step=1, limit=1
              $region106: #{tpu_custom_call.1} parent=104 // loop_pre_header
                _
              $region107: #{tpu_custom_call.1} parent=104 // loop_header
                %s993 = sphi 0, %s997
                %p994 = scmp.ge.s32.totalorder %s993, 1
                %s998 = sphi %s901, %s901
                %s999 = sphi %s984, %s984
              $region108: #{tpu_custom_call.1} parent=104 // loop_header_branch
                %996 = sbr.rel (%p994) target = $region112
              $region109: #{tpu_custom_call.1} parent=104 // loop_body
                %v1000 = vld [vmem:[%s998] sm:$0xf]
                %1001 = vst [vmem:[%s999] sm:$0xf] %v1000
                %v1002 = vld [vmem:[%s998 + $0x4] sm:$0xf]
                %1003 = vst [vmem:[%s999 + $0x4] sm:$0xf] %v1002
                %v1004 = vld [vmem:[%s998 + $0x8] sm:$0xf]
                %1005 = vst [vmem:[%s999 + $0x10] sm:$0xf] %v1004
                %v1006 = vld [vmem:[%s998 + $0xc] sm:$0xf]
                %1007 = vst [vmem:[%s999 + $0x14] sm:$0xf] %v1006
                %v1008 = vld [vmem:[%s998 + $0x10] sm:$0xf]
                %1009 = vst [vmem:[%s999 + $0x20] sm:$0xf] %v1008
                %v1010 = vld [vmem:[%s998 + $0x14] sm:$0xf]
                %1011 = vst [vmem:[%s999 + $0x24] sm:$0xf] %v1010
                %v1012 = vld [vmem:[%s998 + $0x18] sm:$0xf]
                %1013 = vst [vmem:[%s999 + $0x30] sm:$0xf] %v1012
                %v1014 = vld [vmem:[%s998 + $0x1c] sm:$0xf]
                %1015 = vst [vmem:[%s999 + $0x34] sm:$0xf] %v1014
              $region110: #{tpu_custom_call.1} parent=104 // loop_footer
                %s997 = sadd.s32 1, %s993
              $region111: #{tpu_custom_call.1} parent=104 // loop_footer_branch
                %992 = sbr.rel target = $region107
              $region112: #{tpu_custom_call.1} parent=104 // loop_exit
                _
            $region105: #{tpu_custom_call.1} parent=96 // pred_fallthru
              _
          $region97: #{tpu_custom_call.1} parent=92 // pred_fallthru
            _
          %1051 = vnop
        $region93: #{tpu_custom_call.1} parent=43 // pred_fallthru
          _
        // Predicated region
        $region131: #{tpu_custom_call.1} parent=43 // pred_check
          %p1052 = pneg %p232
        $region132: #{tpu_custom_call.1} parent=43 // pred_check_branch
          %1054 = sbr.rel (%p1052) target = $region134
        $region133: #{tpu_custom_call.1} parent=43 // pred_region
          %s1055 = smul.u32 2, %s21
          %s1056 = smul.addr %s1055, 4
          %s1057 = scalar_lea.vmem %s8, %s1056
          // Predicated region
          $region135: #{tpu_custom_call.1} parent=133 // pred_check
            _
          $region136: #{tpu_custom_call.1} parent=133 // pred_check_branch
            %1059 = sbr.rel (0) target = $region138
          $region137: #{tpu_custom_call.1} parent=133 // pred_region
            // Predicated region
            $region139: #{tpu_custom_call.1} parent=137 // pred_check
              _
            $region140: #{tpu_custom_call.1} parent=137 // pred_check_branch
              %1061 = sbr.rel target = $region142
            $region141: #{tpu_custom_call.1} parent=137 // pred_region
              // Predicated region
              $region154: #{tpu_custom_call.1} parent=141 // pred_check
                _
              $region155: #{tpu_custom_call.1} parent=141 // pred_check_branch
                %1090 = sbr.rel (0) target = $region157
              $region156: #{tpu_custom_call.1} parent=141 // pred_region
                loop: start=0, step=1, limit=1
                $region158: #{tpu_custom_call.1} parent=156 // loop_pre_header
                  _
                $region159: #{tpu_custom_call.1} parent=156 // loop_header
                  %s1092 = sphi 0, %s1096
                  %p1093 = scmp.ge.s32.totalorder %s1092, 1
                  %s1097 = sphi %s905, %s905
                  %s1098 = sphi %s1057, %s1057
                $region160: #{tpu_custom_call.1} parent=156 // loop_header_branch
                  %1095 = sbr.rel (%p1093) target = $region164
                $region161: #{tpu_custom_call.1} parent=156 // loop_body
                  _
                $region162: #{tpu_custom_call.1} parent=156 // loop_footer
                  %s1096 = sadd.s32 1, %s1092
                $region163: #{tpu_custom_call.1} parent=156 // loop_footer_branch
                  %1091 = sbr.rel target = $region159
                $region164: #{tpu_custom_call.1} parent=156 // loop_exit
                  _
                loop: start=0, step=1, limit=1
                $region165: #{tpu_custom_call.1} parent=156 // loop_pre_header
                  _
                $region166: #{tpu_custom_call.1} parent=156 // loop_header
                  %s1101 = sphi 0, %s1105
                  %p1102 = scmp.ge.s32.totalorder %s1101, 1
                  %s1106 = sphi %s905, %s905
                  %s1107 = sphi %s1057, %s1057
                $region167: #{tpu_custom_call.1} parent=156 // loop_header_branch
                  %1104 = sbr.rel (%p1102) target = $region171
                $region168: #{tpu_custom_call.1} parent=156 // loop_body
                  %v1108 = vld [vmem:[%s1106] sm:$0xf]
                  %1109 = vst [vmem:[%s1107] sm:$0xf] %v1108
                  %v1110 = vld [vmem:[%s1106 + $0x4] sm:$0xf]
                  %1111 = vst [vmem:[%s1107 + $0x4] sm:$0xf] %v1110
                  %v1112 = vld [vmem:[%s1106 + $0x8] sm:$0xf]
                  %1113 = vst [vmem:[%s1107 + $0x10] sm:$0xf] %v1112
                  %v1114 = vld [vmem:[%s1106 + $0xc] sm:$0xf]
                  %1115 = vst [vmem:[%s1107 + $0x14] sm:$0xf] %v1114
                  %v1116 = vld [vmem:[%s1106 + $0x10] sm:$0xf]
                  %1117 = vst [vmem:[%s1107 + $0x20] sm:$0xf] %v1116
                  %v1118 = vld [vmem:[%s1106 + $0x14] sm:$0xf]
                  %1119 = vst [vmem:[%s1107 + $0x24] sm:$0xf] %v1118
                  %v1120 = vld [vmem:[%s1106 + $0x18] sm:$0xf]
                  %1121 = vst [vmem:[%s1107 + $0x30] sm:$0xf] %v1120
                  %v1122 = vld [vmem:[%s1106 + $0x1c] sm:$0xf]
                  %1123 = vst [vmem:[%s1107 + $0x34] sm:$0xf] %v1122
                $region169: #{tpu_custom_call.1} parent=156 // loop_footer
                  %s1105 = sadd.s32 1, %s1101
                $region170: #{tpu_custom_call.1} parent=156 // loop_footer_branch
                  %1100 = sbr.rel target = $region166
                $region171: #{tpu_custom_call.1} parent=156 // loop_exit
                  _
              $region157: #{tpu_custom_call.1} parent=141 // pred_fallthru
                _
            $region142: #{tpu_custom_call.1} parent=137 // pred_fallthru
              _
            // Predicated region
            $region143: #{tpu_custom_call.1} parent=137 // pred_check
              _
            $region144: #{tpu_custom_call.1} parent=137 // pred_check_branch
              %1063 = sbr.rel (0) target = $region146
            $region145: #{tpu_custom_call.1} parent=137 // pred_region
              loop: start=0, step=1, limit=1
              $region147: #{tpu_custom_call.1} parent=145 // loop_pre_header
                _
              $region148: #{tpu_custom_call.1} parent=145 // loop_header
                %s1066 = sphi 0, %s1070
                %p1067 = scmp.ge.s32.totalorder %s1066, 1
                %s1071 = sphi %s905, %s905
                %s1072 = sphi %s1057, %s1057
              $region149: #{tpu_custom_call.1} parent=145 // loop_header_branch
                %1069 = sbr.rel (%p1067) target = $region153
              $region150: #{tpu_custom_call.1} parent=145 // loop_body
                %v1073 = vld [vmem:[%s1071] sm:$0xf]
                %1074 = vst [vmem:[%s1072] sm:$0xf] %v1073
                %v1075 = vld [vmem:[%s1071 + $0x4] sm:$0xf]
                %1076 = vst [vmem:[%s1072 + $0x4] sm:$0xf] %v1075
                %v1077 = vld [vmem:[%s1071 + $0x8] sm:$0xf]
                %1078 = vst [vmem:[%s1072 + $0x10] sm:$0xf] %v1077
                %v1079 = vld [vmem:[%s1071 + $0xc] sm:$0xf]
                %1080 = vst [vmem:[%s1072 + $0x14] sm:$0xf] %v1079
                %v1081 = vld [vmem:[%s1071 + $0x10] sm:$0xf]
                %1082 = vst [vmem:[%s1072 + $0x20] sm:$0xf] %v1081
                %v1083 = vld [vmem:[%s1071 + $0x14] sm:$0xf]
                %1084 = vst [vmem:[%s1072 + $0x24] sm:$0xf] %v1083
                %v1085 = vld [vmem:[%s1071 + $0x18] sm:$0xf]
                %1086 = vst [vmem:[%s1072 + $0x30] sm:$0xf] %v1085
                %v1087 = vld [vmem:[%s1071 + $0x1c] sm:$0xf]
                %1088 = vst [vmem:[%s1072 + $0x34] sm:$0xf] %v1087
              $region151: #{tpu_custom_call.1} parent=145 // loop_footer
                %s1070 = sadd.s32 1, %s1066
              $region152: #{tpu_custom_call.1} parent=145 // loop_footer_branch
                %1065 = sbr.rel target = $region148
              $region153: #{tpu_custom_call.1} parent=145 // loop_exit
                _
            $region146: #{tpu_custom_call.1} parent=137 // pred_fallthru
              _
          $region138: #{tpu_custom_call.1} parent=133 // pred_fallthru
            _
          %1124 = vnop
        $region134: #{tpu_custom_call.1} parent=43 // pred_fallthru
          _
      $region44: #{tpu_custom_call.1} parent=5 // pred_fallthru
        _
      %p1125 = scmp.le.s32.totalorder 2, %s16
      // Predicated region
      $region172: #{tpu_custom_call.1} parent=5 // pred_check
        %p1126 = pneg %p1125
      $region173: #{tpu_custom_call.1} parent=5 // pred_check_branch
        %1128 = sbr.rel (%p1126) target = $region175
      $region174: #{tpu_custom_call.1} parent=5 // pred_region
        %s1129 = ssub.s32 %s16, 2
        // Predicated region
        $region176: #{tpu_custom_call.1} parent=174 // pred_check
          %p1130 = pneg %p186
        $region177: #{tpu_custom_call.1} parent=174 // pred_check_branch
          %1132 = sbr.rel (%p1130) target = $region179
        $region178: #{tpu_custom_call.1} parent=174 // pred_region
          %s1133 = sand.u32 %s171, 1
          %s1134 = sand.u32 %s171, 1
          %s1135 = smul.addr %s1134, 32
          %s1136 = scalar_lea.vmem [#allocation4], %s1135
        $region179: #{tpu_custom_call.1} parent=174 // pred_fallthru
          _
        // Predicated region
        $region180: #{tpu_custom_call.1} parent=174 // pred_check
          %p1137 = pneg %p212
        $region181: #{tpu_custom_call.1} parent=174 // pred_check_branch
          %1139 = sbr.rel (%p1137) target = $region183
        $region182: #{tpu_custom_call.1} parent=174 // pred_region
          %s1140 = sand.u32 %s197, 1
          %s1141 = sand.u32 %s197, 1
          %s1142 = smul.addr %s1141, 32
          %s1143 = scalar_lea.vmem [#allocation5], %s1142
        $region183: #{tpu_custom_call.1} parent=174 // pred_fallthru
          _
        // Predicated region
        $region184: #{tpu_custom_call.1} parent=174 // pred_check
          %p1144 = pneg %p238
        $region185: #{tpu_custom_call.1} parent=174 // pred_check_branch
          %1146 = sbr.rel (%p1144) target = $region187
        $region186: #{tpu_custom_call.1} parent=174 // pred_region
          %s1147 = sand.u32 %s223, 1
          %s1148 = sand.u32 %s223, 1
          %s1149 = smul.addr %s1148, 32
          %s1150 = scalar_lea.vmem [#allocation6], %s1149
        $region187: #{tpu_custom_call.1} parent=174 // pred_fallthru
          _
      $region175: #{tpu_custom_call.1} parent=5 // pred_fallthru
        _
    $region6: #{tpu_custom_call.1} parent=1 // loop_footer
      %s20 = sadd.s32 1, %s16
    $region7: #{tpu_custom_call.1} parent=1 // loop_footer_branch
      %15 = sbr.rel target = $region3
    $region8: #{tpu_custom_call.1} parent=1 // loop_exit
      _
    %1151 = vsyncpa [#allocation3], 1
    %s1152 = scalar_lea.sflag [#allocation3], 1
    %1153 = vsyncpa %s1152, 1

</llo_original>
